<compile_context>
chip_gen: v5e
topology: v5e:2x2
jax: 0.10.0
libtpu: 0.0.40
codegen_flags: <defaults>
</compile_context>

<pallas_src>
import math
import jax
import jax.numpy as jnp
from jax.experimental import pallas as pl
from jax.experimental.pallas import tpu as pltpu

# ----------------------------- small config ---------------------------------
VOCAB = 100        # vocab_size
VOCAB_PAD = 128    # vocab padded to a full lane width for the one-hot gather
MAX_POS = 64       # max_position_embeddings
B, S = 2, 8        # batch, sequence length
BS = B * S
H = 32             # hidden_size
NH = 4             # num_attention_heads
HD = H // NH       # head dim
INTER = 64         # intermediate_size
NLAYERS = 2        # num_hidden_layers
LN_EPS = 1e-12     # BertGenerationConfig default layer_norm_eps

_SQRT_2 = math.sqrt(2.0)
_NEG_INF = -1e9
# contract last dim of both operands: q @ k^T without materializing k^T
_NT_DIMS = (((1,), (1,)), ((), ()))


# ------------------------------ kernel helpers --------------------------------
def _layernorm(x, g, b):
    mu = jnp.mean(x, axis=-1, keepdims=True)
    var = jnp.mean(jnp.square(x - mu), axis=-1, keepdims=True)
    return (x - mu) * jax.lax.rsqrt(var + LN_EPS) * g + b


def _gelu_exact(x):
    # HF "gelu" (exact erf formulation)
    return 0.5 * x * (1.0 + jax.lax.erf(x / _SQRT_2))


# ------------------------------ fused kernel ----------------------------------
def fused_encoder_kernel(ids_ref, mask_ref, wemb_ref, pemb_ref, gvec_ref,
                         wqkv_ref, bqkv_ref, wo_ref, w1_ref, b1_ref, w2_ref,
                         lvec_ref, wp_ref,
                         hidden_ref, pooled_ref):
    # ---- embeddings: one-hot MXU gather + pre-tiled position add + LayerNorm
    ids = ids_ref[...]                                            # (BS, 1) i32
    lane = jax.lax.broadcasted_iota(jnp.int32, (BS, VOCAB_PAD), 1)
    onehot = (lane == ids).astype(jnp.float32)                    # (BS, 128)
    we = jnp.dot(onehot, wemb_ref[...],
                 preferred_element_type=jnp.float32)              # (BS, H)
    x = _layernorm(we + pemb_ref[...], gvec_ref[0:1, :], gvec_ref[1:2, :])

    # ---- additive attention bias, hoisted once (block-diagonal over batch) --
    # keep[i, j] = (batch(i) == batch(j)) and attention_mask[j]
    qi = jax.lax.broadcasted_iota(jnp.int32, (BS, BS), 0).astype(jnp.float32)
    ki = jax.lax.broadcasted_iota(jnp.int32, (BS, BS), 1).astype(jnp.float32)
    same_batch = jnp.floor(qi * (1.0 / S)) == jnp.floor(ki * (1.0 / S))
    keep = same_batch & (mask_ref[...] > 0.0)                     # (BS, BS)
    maskb = jnp.where(keep, 0.0, _NEG_INF)                        # (BS, BS) f32

    # ------------------------- encoder layers --------------------------------
    for l in range(NLAYERS):
        lv = lvec_ref[l]                                          # (6, H)
        bo, ln1g, ln1b = lv[0:1, :], lv[1:2, :], lv[2:3, :]
        b2, ln2g, ln2b = lv[3:4, :], lv[4:5, :], lv[5:6, :]

        # fused Q/K/V projection; 1/sqrt(HD) already folded into the Q columns
        qkv = jnp.dot(x, wqkv_ref[l],
                      preferred_element_type=jnp.float32) + bqkv_ref[l]
        q, k, v = qkv[:, 0:H], qkv[:, H:2 * H], qkv[:, 2 * H:3 * H]

        # per-head attention: pure 2-D NT dot_generals over all B*S tokens,
        # cross-batch pairs suppressed by the hoisted block-diagonal bias.
        ctx_heads = []
        for n in range(NH):
            sl = slice(n * HD, (n + 1) * HD)
            scores = jax.lax.dot_general(q[:, sl], k[:, sl], _NT_DIMS,
                                         preferred_element_type=jnp.float32)
            scores = scores + maskb
            p = jnp.exp(scores - jnp.max(scores, axis=-1, keepdims=True))
            p = p / jnp.sum(p, axis=-1, keepdims=True)            # exact recip
            ctx_heads.append(jnp.dot(p, v[:, sl],
                                     preferred_element_type=jnp.float32))
        ctx = jnp.concatenate(ctx_heads, axis=-1)                 # (BS, H)

        # attention output projection + residual + LayerNorm
        attn = jnp.dot(ctx, wo_ref[l],
                       preferred_element_type=jnp.float32) + bo
        x = _layernorm(attn + x, ln1g, ln1b)

        # feed-forward (exact GELU) + residual + LayerNorm
        ff = jnp.dot(x, w1_ref[l],
                     preferred_element_type=jnp.float32) + b1_ref[l]
        ff = _gelu_exact(ff)
        ff = jnp.dot(ff, w2_ref[l],
                     preferred_element_type=jnp.float32) + b2
        x = _layernorm(ff + x, ln2g, ln2b)

    x3 = x.reshape(B, S, H)
    hidden_ref[...] = x3

    # ------------------------- fused BertPooler -------------------------------
    # tanh(Linear(hidden_states[:, 0]))
    h0 = x3[:, 0, :]                                              # (B, H)
    pooled_ref[...] = jnp.tanh(
        jnp.dot(h0, wp_ref[...], preferred_element_type=jnp.float32)
        + gvec_ref[2:3, :])


# --------------------------- host-side parameter prep -------------------------
def pack_params(params):
    """One-time host transform: fuse/stack/pre-scale weights for the kernel."""
    inv_sqrt_hd = 1.0 / math.sqrt(HD)
    wqkv = jnp.concatenate([params['wq'] * inv_sqrt_hd,
                            params['wk'], params['wv']], axis=-1)   # (L, H, 3H)
    bqkv = jnp.concatenate([params['bq'] * inv_sqrt_hd,
                            params['bk'], params['bv']], axis=-1)   # (L, 1, 3H)
    lvec = jnp.concatenate([params['bo'], params['ln1_g'], params['ln1_b'],
                            params['b2'], params['ln2_g'], params['ln2_b']],
                           axis=1)                                  # (L, 6, H)
    gvec = jnp.concatenate([params['emb_ln_g'], params['emb_ln_b'],
                            params['pooler_b']], axis=0)            # (3, H)
    wemb_pad = jnp.pad(params['word_emb'],
                       ((0, VOCAB_PAD - VOCAB), (0, 0)))            # (128, H)
    pemb = jnp.tile(params['pos_emb'][:S], (B, 1))                  # (B*S, H)
    return {'wemb': wemb_pad, 'pemb': pemb, 'gvec': gvec,
            'wqkv': wqkv, 'bqkv': bqkv, 'wo': params['wo'],
            'w1': params['w1'], 'b1': params['b1'], 'w2': params['w2'],
            'lvec': lvec, 'wp': params['pooler_w']}


# ------------------------------ wrapper ---------------------------------------
def run_encoder(packed, input_ids, attention_mask):
    vmem = pl.BlockSpec(memory_space=pltpu.MemorySpace.VMEM)

    ids_col = input_ids.reshape(BS, 1).astype(jnp.int32)
    mask_row = attention_mask.astype(jnp.float32).reshape(1, BS)

    args = (ids_col, mask_row, packed['wemb'], packed['pemb'], packed['gvec'],
            packed['wqkv'], packed['bqkv'], packed['wo'], packed['w1'],
            packed['b1'], packed['w2'], packed['lvec'], packed['wp'])

    hidden, pooled = pl.pallas_call(
        fused_encoder_kernel,
        out_shape=(jax.ShapeDtypeStruct((B, S, H), jnp.float32),
                   jax.ShapeDtypeStruct((B, H), jnp.float32)),
        in_specs=[vmem] * len(args),
        out_specs=(vmem, vmem),
    )(*args)

    # mirrors HF return_dict=True + the wrapper's pooler_output attribute
    return {'last_hidden_state': hidden, 'pooler_output': pooled}


# --------------------------- parameter init -----------------------------------
def init_params(key):
    std = 0.02  # BERT initializer_range

    def normal(k, shape):
        return std * jax.random.normal(k, shape, dtype=jnp.float32)

    keys = jax.random.split(key, 9)
    params = {
        'word_emb': normal(keys[0], (VOCAB, H)),
        'pos_emb': normal(keys[1], (MAX_POS, H)),
        'emb_ln_g': jnp.ones((1, H), jnp.float32),
        'emb_ln_b': jnp.zeros((1, H), jnp.float32),
        'pooler_w': normal(keys[2], (H, H)),
        'pooler_b': jnp.zeros((1, H), jnp.float32),
        # per-layer weights stacked along a leading layer axis
        'wq': normal(keys[3], (NLAYERS, H, H)),
        'bq': jnp.zeros((NLAYERS, 1, H), jnp.float32),
        'wk': normal(keys[4], (NLAYERS, H, H)),
        'bk': jnp.zeros((NLAYERS, 1, H), jnp.float32),
        'wv': normal(keys[5], (NLAYERS, H, H)),
        'bv': jnp.zeros((NLAYERS, 1, H), jnp.float32),
        'wo': normal(keys[6], (NLAYERS, H, H)),
        'bo': jnp.zeros((NLAYERS, 1, H), jnp.float32),
        'ln1_g': jnp.ones((NLAYERS, 1, H), jnp.float32),
        'ln1_b': jnp.zeros((NLAYERS, 1, H), jnp.float32),
        'w1': normal(keys[7], (NLAYERS, H, INTER)),
        'b1': jnp.zeros((NLAYERS, 1, INTER), jnp.float32),
        'w2': normal(keys[8], (NLAYERS, INTER, H)),
        'b2': jnp.zeros((NLAYERS, 1, H), jnp.float32),
        'ln2_g': jnp.ones((NLAYERS, 1, H), jnp.float32),
        'ln2_b': jnp.zeros((NLAYERS, 1, H), jnp.float32),
    }
    return params


# ------------------------------- main ------------------------------------------
if __name__ == "__main__":
    root = jax.random.PRNGKey(0)
    pkey, ikey = jax.random.split(root)
    params = init_params(pkey)
    packed = pack_params(params)   # one-time host-side weight prep

    input_ids = jax.random.randint(ikey, (B, S), 0, VOCAB, dtype=jnp.int32)
    # pad out the last two tokens of batch element 1 to exercise the mask
    attention_mask = jnp.ones((B, S), dtype=jnp.int32).at[1, 6:].set(0)

    # TODO(synk): checkpoint loading (load_pretrained) is pure file I/O and is
    # intentionally not reproduced; weights are synthetic.
    out = run_encoder(packed, input_ids, attention_mask)
    jax.block_until_ready(out)

    assert out['last_hidden_state'].shape == (B, S, H)
    assert out['pooler_output'].shape == (B, H)
    assert bool(jnp.all(jnp.isfinite(out['last_hidden_state'])))
    assert bool(jnp.all(jnp.isfinite(out['pooler_output'])))
    print("KERNEL_OK")
</pallas_src>

<mosaic_0001>
module attributes {stable_mosaic.version = 11 : i64} {
  func.func @fused_encoder_kernel(%arg0: memref<16x1xi32, #tpu.memory_space<vmem>>, %arg1: memref<1x16xf32, #tpu.memory_space<vmem>>, %arg2: memref<128x32xf32, #tpu.memory_space<vmem>>, %arg3: memref<16x32xf32, #tpu.memory_space<vmem>>, %arg4: memref<3x32xf32, #tpu.memory_space<vmem>>, %arg5: memref<2x32x96xf32, #tpu.memory_space<vmem>>, %arg6: memref<2x1x96xf32, #tpu.memory_space<vmem>>, %arg7: memref<2x32x32xf32, #tpu.memory_space<vmem>>, %arg8: memref<2x32x64xf32, #tpu.memory_space<vmem>>, %arg9: memref<2x1x64xf32, #tpu.memory_space<vmem>>, %arg10: memref<2x64x32xf32, #tpu.memory_space<vmem>>, %arg11: memref<2x6x32xf32, #tpu.memory_space<vmem>>, %arg12: memref<32x32xf32, #tpu.memory_space<vmem>>, %arg13: memref<2x8x32xf32, #tpu.memory_space<vmem>>, %arg14: memref<2x32xf32, #tpu.memory_space<vmem>>) attributes {dimension_semantics = [], scalar_prefetch = 0 : i64, scratch_operands = 0 : i64, tpu.core_type = #tpu.core_type<tc>} {
    %c0 = arith.constant 0 : index
    %c0_0 = arith.constant 0 : index
    %0 = vector.load %arg0[%c0, %c0_0] : memref<16x1xi32, #tpu.memory_space<vmem>>, vector<16x1xi32>
    %1 = tpu.iota {dimensions = array<i32: 1>} : vector<16x128xi32>
    %2 = vector.broadcast %0 : vector<16x1xi32> to vector<16x128xi32>
    %3 = arith.cmpi eq, %1, %2 : vector<16x128xi32>
    %4 = arith.extui %3 : vector<16x128xi1> to vector<16x128xi32>
    %5 = arith.sitofp %4 : vector<16x128xi32> to vector<16x128xf32>
    %c0_1 = arith.constant 0 : index
    %c0_2 = arith.constant 0 : index
    %6 = vector.load %arg2[%c0_1, %c0_2] : memref<128x32xf32, #tpu.memory_space<vmem>>, vector<128x32xf32>
    %cst = arith.constant dense<0.000000e+00> : vector<16x32xf32>
    %7 = tpu.matmul %5, %6, %cst {dimension_numbers = #tpu.dot_dimension_numbers<[1], [0], [0], [1], [0, 0, 1, 1], [], []>} : vector<16x128xf32>, vector<128x32xf32>, vector<16x32xf32> -> vector<16x32xf32>
    %c0_3 = arith.constant 0 : index
    %c0_4 = arith.constant 0 : index
    %8 = vector.load %arg3[%c0_3, %c0_4] : memref<16x32xf32, #tpu.memory_space<vmem>>, vector<16x32xf32>
    %9 = arith.addf %7, %8 : vector<16x32xf32>
    %c0_5 = arith.constant 0 : index
    %c0_6 = arith.constant 0 : index
    %10 = vector.load %arg4[%c0_5, %c0_6] : memref<3x32xf32, #tpu.memory_space<vmem>>, vector<1x32xf32>
    %c1 = arith.constant 1 : index
    %c0_7 = arith.constant 0 : index
    %11 = vector.load %arg4[%c1, %c0_7] : memref<3x32xf32, #tpu.memory_space<vmem>>, vector<1x32xf32>
    %cst_8 = arith.constant dense<0.000000e+00> : vector<16xf32>
    %12 = vector.multi_reduction <add>, %9, %cst_8 [1] : vector<16x32xf32> to vector<16xf32>
    %13 = vector.shape_cast %12 : vector<16xf32> to vector<16x1xf32>
    %cst_9 = arith.constant 3.200000e+01 : f32
    %14 = vector.broadcast %cst_9 : f32 to vector<16x1xf32>
    %15 = arith.divf %13, %14 : vector<16x1xf32>
    %16 = vector.broadcast %15 : vector<16x1xf32> to vector<16x32xf32>
    %17 = arith.subf %9, %16 : vector<16x32xf32>
    %18 = arith.mulf %17, %17 : vector<16x32xf32>
    %cst_10 = arith.constant dense<0.000000e+00> : vector<16xf32>
    %19 = vector.multi_reduction <add>, %18, %cst_10 [1] : vector<16x32xf32> to vector<16xf32>
    %20 = vector.shape_cast %19 : vector<16xf32> to vector<16x1xf32>
    %cst_11 = arith.constant 3.200000e+01 : f32
    %21 = vector.broadcast %cst_11 : f32 to vector<16x1xf32>
    %22 = arith.divf %20, %21 : vector<16x1xf32>
    %23 = vector.broadcast %15 : vector<16x1xf32> to vector<16x32xf32>
    %24 = arith.subf %9, %23 : vector<16x32xf32>
    %cst_12 = arith.constant 9.99999996E-13 : f32
    %25 = vector.broadcast %cst_12 : f32 to vector<16x1xf32>
    %26 = arith.addf %22, %25 : vector<16x1xf32>
    %27 = math.rsqrt %26 : vector<16x1xf32>
    %28 = vector.broadcast %27 : vector<16x1xf32> to vector<16x32xf32>
    %29 = arith.mulf %24, %28 : vector<16x32xf32>
    %30 = vector.broadcast %10 : vector<1x32xf32> to vector<16x32xf32>
    %31 = arith.mulf %29, %30 : vector<16x32xf32>
    %32 = vector.broadcast %11 : vector<1x32xf32> to vector<16x32xf32>
    %33 = arith.addf %31, %32 : vector<16x32xf32>
    %34 = tpu.iota {dimensions = array<i32: 0>} : vector<16x16xi32>
    %35 = arith.sitofp %34 : vector<16x16xi32> to vector<16x16xf32>
    %36 = tpu.iota {dimensions = array<i32: 1>} : vector<16x16xi32>
    %37 = arith.sitofp %36 : vector<16x16xi32> to vector<16x16xf32>
    %cst_13 = arith.constant 1.250000e-01 : f32
    %38 = vector.broadcast %cst_13 : f32 to vector<16x16xf32>
    %39 = arith.mulf %35, %38 : vector<16x16xf32>
    %40 = math.floor %39 : vector<16x16xf32>
    %cst_14 = arith.constant 1.250000e-01 : f32
    %41 = vector.broadcast %cst_14 : f32 to vector<16x16xf32>
    %42 = arith.mulf %37, %41 : vector<16x16xf32>
    %43 = math.floor %42 : vector<16x16xf32>
    %44 = arith.cmpf oeq, %40, %43 : vector<16x16xf32>
    %c0_15 = arith.constant 0 : index
    %c0_16 = arith.constant 0 : index
    %45 = vector.load %arg1[%c0_15, %c0_16] : memref<1x16xf32, #tpu.memory_space<vmem>>, vector<1x16xf32>
    %cst_17 = arith.constant 0.000000e+00 : f32
    %46 = vector.broadcast %cst_17 : f32 to vector<1x16xf32>
    %47 = arith.cmpf ogt, %45, %46 : vector<1x16xf32>
    %48 = vector.broadcast %47 : vector<1x16xi1> to vector<16x16xi1>
    %49 = arith.andi %44, %48 : vector<16x16xi1>
    %cst_18 = arith.constant 0.000000e+00 : f32
    %cst_19 = arith.constant -1.000000e+09 : f32
    %50 = vector.broadcast %cst_18 : f32 to vector<16x16xf32>
    %51 = vector.broadcast %cst_19 : f32 to vector<16x16xf32>
    %52 = arith.select %49, %50, %51 : vector<16x16xi1>, vector<16x16xf32>
    %c0_20 = arith.constant 0 : index
    %c0_21 = arith.constant 0 : index
    %c0_22 = arith.constant 0 : index
    %53 = vector.load %arg11[%c0_20, %c0_21, %c0_22] : memref<2x6x32xf32, #tpu.memory_space<vmem>>, vector<1x6x32xf32>
    %54 = vector.shape_cast %53 : vector<1x6x32xf32> to vector<6x32xf32>
    %55 = vector.extract_strided_slice %54 {offsets = [0, 0], sizes = [1, 32], strides = [1, 1]} : vector<6x32xf32> to vector<1x32xf32>
    %56 = vector.extract_strided_slice %54 {offsets = [1, 0], sizes = [1, 32], strides = [1, 1]} : vector<6x32xf32> to vector<1x32xf32>
    %57 = vector.extract_strided_slice %54 {offsets = [2, 0], sizes = [1, 32], strides = [1, 1]} : vector<6x32xf32> to vector<1x32xf32>
    %58 = vector.extract_strided_slice %54 {offsets = [3, 0], sizes = [1, 32], strides = [1, 1]} : vector<6x32xf32> to vector<1x32xf32>
    %59 = vector.extract_strided_slice %54 {offsets = [4, 0], sizes = [1, 32], strides = [1, 1]} : vector<6x32xf32> to vector<1x32xf32>
    %60 = vector.extract_strided_slice %54 {offsets = [5, 0], sizes = [1, 32], strides = [1, 1]} : vector<6x32xf32> to vector<1x32xf32>
    %c0_23 = arith.constant 0 : index
    %c0_24 = arith.constant 0 : index
    %c0_25 = arith.constant 0 : index
    %61 = vector.load %arg5[%c0_23, %c0_24, %c0_25] : memref<2x32x96xf32, #tpu.memory_space<vmem>>, vector<1x32x96xf32>
    %62 = vector.shape_cast %61 : vector<1x32x96xf32> to vector<32x96xf32>
    %cst_26 = arith.constant dense<0.000000e+00> : vector<16x96xf32>
    %63 = tpu.matmul %33, %62, %cst_26 {dimension_numbers = #tpu.dot_dimension_numbers<[1], [0], [0], [1], [0, 0, 1, 1], [], []>} : vector<16x32xf32>, vector<32x96xf32>, vector<16x96xf32> -> vector<16x96xf32>
    %c0_27 = arith.constant 0 : index
    %c0_28 = arith.constant 0 : index
    %c0_29 = arith.constant 0 : index
    %64 = vector.load %arg6[%c0_27, %c0_28, %c0_29] : memref<2x1x96xf32, #tpu.memory_space<vmem>>, vector<1x1x96xf32>
    %65 = vector.shape_cast %64 : vector<1x1x96xf32> to vector<1x96xf32>
    %66 = vector.broadcast %65 : vector<1x96xf32> to vector<16x96xf32>
    %67 = arith.addf %63, %66 : vector<16x96xf32>
    %68 = vector.extract_strided_slice %67 {offsets = [0, 0], sizes = [16, 32], strides = [1, 1]} : vector<16x96xf32> to vector<16x32xf32>
    %69 = vector.extract_strided_slice %67 {offsets = [0, 32], sizes = [16, 32], strides = [1, 1]} : vector<16x96xf32> to vector<16x32xf32>
    %70 = vector.extract_strided_slice %67 {offsets = [0, 64], sizes = [16, 32], strides = [1, 1]} : vector<16x96xf32> to vector<16x32xf32>
    %71 = vector.extract_strided_slice %68 {offsets = [0, 0], sizes = [16, 8], strides = [1, 1]} : vector<16x32xf32> to vector<16x8xf32>
    %72 = vector.extract_strided_slice %69 {offsets = [0, 0], sizes = [16, 8], strides = [1, 1]} : vector<16x32xf32> to vector<16x8xf32>
    %cst_30 = arith.constant dense<0.000000e+00> : vector<16x16xf32>
    %73 = tpu.matmul %71, %72, %cst_30 {dimension_numbers = #tpu.dot_dimension_numbers<[1], [1], [0], [0], [0, 0, 1, 0], [], []>} : vector<16x8xf32>, vector<16x8xf32>, vector<16x16xf32> -> vector<16x16xf32>
    %74 = arith.addf %73, %52 : vector<16x16xf32>
    %cst_31 = arith.constant dense<0xFF800000> : vector<16xf32>
    %75 = vector.multi_reduction <maximumf>, %74, %cst_31 [1] : vector<16x16xf32> to vector<16xf32>
    %76 = vector.shape_cast %75 : vector<16xf32> to vector<16x1xf32>
    %77 = vector.broadcast %76 : vector<16x1xf32> to vector<16x16xf32>
    %78 = arith.subf %74, %77 : vector<16x16xf32>
    %79 = math.exp %78 : vector<16x16xf32>
    %cst_32 = arith.constant dense<0.000000e+00> : vector<16xf32>
    %80 = vector.multi_reduction <add>, %79, %cst_32 [1] : vector<16x16xf32> to vector<16xf32>
    %81 = vector.shape_cast %80 : vector<16xf32> to vector<16x1xf32>
    %82 = vector.broadcast %81 : vector<16x1xf32> to vector<16x16xf32>
    %83 = arith.divf %79, %82 : vector<16x16xf32>
    %84 = vector.extract_strided_slice %70 {offsets = [0, 0], sizes = [16, 8], strides = [1, 1]} : vector<16x32xf32> to vector<16x8xf32>
    %cst_33 = arith.constant dense<0.000000e+00> : vector<16x8xf32>
    %85 = tpu.matmul %83, %84, %cst_33 {dimension_numbers = #tpu.dot_dimension_numbers<[1], [0], [0], [1], [0, 0, 1, 1], [], []>} : vector<16x16xf32>, vector<16x8xf32>, vector<16x8xf32> -> vector<16x8xf32>
    %86 = vector.extract_strided_slice %68 {offsets = [0, 8], sizes = [16, 8], strides = [1, 1]} : vector<16x32xf32> to vector<16x8xf32>
    %87 = vector.extract_strided_slice %69 {offsets = [0, 8], sizes = [16, 8], strides = [1, 1]} : vector<16x32xf32> to vector<16x8xf32>
    %cst_34 = arith.constant dense<0.000000e+00> : vector<16x16xf32>
    %88 = tpu.matmul %86, %87, %cst_34 {dimension_numbers = #tpu.dot_dimension_numbers<[1], [1], [0], [0], [0, 0, 1, 0], [], []>} : vector<16x8xf32>, vector<16x8xf32>, vector<16x16xf32> -> vector<16x16xf32>
    %89 = arith.addf %88, %52 : vector<16x16xf32>
    %cst_35 = arith.constant dense<0xFF800000> : vector<16xf32>
    %90 = vector.multi_reduction <maximumf>, %89, %cst_35 [1] : vector<16x16xf32> to vector<16xf32>
    %91 = vector.shape_cast %90 : vector<16xf32> to vector<16x1xf32>
    %92 = vector.broadcast %91 : vector<16x1xf32> to vector<16x16xf32>
    %93 = arith.subf %89, %92 : vector<16x16xf32>
    %94 = math.exp %93 : vector<16x16xf32>
    %cst_36 = arith.constant dense<0.000000e+00> : vector<16xf32>
    %95 = vector.multi_reduction <add>, %94, %cst_36 [1] : vector<16x16xf32> to vector<16xf32>
    %96 = vector.shape_cast %95 : vector<16xf32> to vector<16x1xf32>
    %97 = vector.broadcast %96 : vector<16x1xf32> to vector<16x16xf32>
    %98 = arith.divf %94, %97 : vector<16x16xf32>
    %99 = vector.extract_strided_slice %70 {offsets = [0, 8], sizes = [16, 8], strides = [1, 1]} : vector<16x32xf32> to vector<16x8xf32>
    %cst_37 = arith.constant dense<0.000000e+00> : vector<16x8xf32>
    %100 = tpu.matmul %98, %99, %cst_37 {dimension_numbers = #tpu.dot_dimension_numbers<[1], [0], [0], [1], [0, 0, 1, 1], [], []>} : vector<16x16xf32>, vector<16x8xf32>, vector<16x8xf32> -> vector<16x8xf32>
    %101 = vector.extract_strided_slice %68 {offsets = [0, 16], sizes = [16, 8], strides = [1, 1]} : vector<16x32xf32> to vector<16x8xf32>
    %102 = vector.extract_strided_slice %69 {offsets = [0, 16], sizes = [16, 8], strides = [1, 1]} : vector<16x32xf32> to vector<16x8xf32>
    %cst_38 = arith.constant dense<0.000000e+00> : vector<16x16xf32>
    %103 = tpu.matmul %101, %102, %cst_38 {dimension_numbers = #tpu.dot_dimension_numbers<[1], [1], [0], [0], [0, 0, 1, 0], [], []>} : vector<16x8xf32>, vector<16x8xf32>, vector<16x16xf32> -> vector<16x16xf32>
    %104 = arith.addf %103, %52 : vector<16x16xf32>
    %cst_39 = arith.constant dense<0xFF800000> : vector<16xf32>
    %105 = vector.multi_reduction <maximumf>, %104, %cst_39 [1] : vector<16x16xf32> to vector<16xf32>
    %106 = vector.shape_cast %105 : vector<16xf32> to vector<16x1xf32>
    %107 = vector.broadcast %106 : vector<16x1xf32> to vector<16x16xf32>
    %108 = arith.subf %104, %107 : vector<16x16xf32>
    %109 = math.exp %108 : vector<16x16xf32>
    %cst_40 = arith.constant dense<0.000000e+00> : vector<16xf32>
    %110 = vector.multi_reduction <add>, %109, %cst_40 [1] : vector<16x16xf32> to vector<16xf32>
    %111 = vector.shape_cast %110 : vector<16xf32> to vector<16x1xf32>
    %112 = vector.broadcast %111 : vector<16x1xf32> to vector<16x16xf32>
    %113 = arith.divf %109, %112 : vector<16x16xf32>
    %114 = vector.extract_strided_slice %70 {offsets = [0, 16], sizes = [16, 8], strides = [1, 1]} : vector<16x32xf32> to vector<16x8xf32>
    %cst_41 = arith.constant dense<0.000000e+00> : vector<16x8xf32>
    %115 = tpu.matmul %113, %114, %cst_41 {dimension_numbers = #tpu.dot_dimension_numbers<[1], [0], [0], [1], [0, 0, 1, 1], [], []>} : vector<16x16xf32>, vector<16x8xf32>, vector<16x8xf32> -> vector<16x8xf32>
    %116 = vector.extract_strided_slice %68 {offsets = [0, 24], sizes = [16, 8], strides = [1, 1]} : vector<16x32xf32> to vector<16x8xf32>
    %117 = vector.extract_strided_slice %69 {offsets = [0, 24], sizes = [16, 8], strides = [1, 1]} : vector<16x32xf32> to vector<16x8xf32>
    %cst_42 = arith.constant dense<0.000000e+00> : vector<16x16xf32>
    %118 = tpu.matmul %116, %117, %cst_42 {dimension_numbers = #tpu.dot_dimension_numbers<[1], [1], [0], [0], [0, 0, 1, 0], [], []>} : vector<16x8xf32>, vector<16x8xf32>, vector<16x16xf32> -> vector<16x16xf32>
    %119 = arith.addf %118, %52 : vector<16x16xf32>
    %cst_43 = arith.constant dense<0xFF800000> : vector<16xf32>
    %120 = vector.multi_reduction <maximumf>, %119, %cst_43 [1] : vector<16x16xf32> to vector<16xf32>
    %121 = vector.shape_cast %120 : vector<16xf32> to vector<16x1xf32>
    %122 = vector.broadcast %121 : vector<16x1xf32> to vector<16x16xf32>
    %123 = arith.subf %119, %122 : vector<16x16xf32>
    %124 = math.exp %123 : vector<16x16xf32>
    %cst_44 = arith.constant dense<0.000000e+00> : vector<16xf32>
    %125 = vector.multi_reduction <add>, %124, %cst_44 [1] : vector<16x16xf32> to vector<16xf32>
    %126 = vector.shape_cast %125 : vector<16xf32> to vector<16x1xf32>
    %127 = vector.broadcast %126 : vector<16x1xf32> to vector<16x16xf32>
    %128 = arith.divf %124, %127 : vector<16x16xf32>
    %129 = vector.extract_strided_slice %70 {offsets = [0, 24], sizes = [16, 8], strides = [1, 1]} : vector<16x32xf32> to vector<16x8xf32>
    %cst_45 = arith.constant dense<0.000000e+00> : vector<16x8xf32>
    %130 = tpu.matmul %128, %129, %cst_45 {dimension_numbers = #tpu.dot_dimension_numbers<[1], [0], [0], [1], [0, 0, 1, 1], [], []>} : vector<16x16xf32>, vector<16x8xf32>, vector<16x8xf32> -> vector<16x8xf32>
    %131 = tpu.concatenate %85, %100, %115, %130 in 1 : vector<16x8xf32>, vector<16x8xf32>, vector<16x8xf32>, vector<16x8xf32> -> vector<16x32xf32>
    %c0_46 = arith.constant 0 : index
    %c0_47 = arith.constant 0 : index
    %c0_48 = arith.constant 0 : index
    %132 = vector.load %arg7[%c0_46, %c0_47, %c0_48] : memref<2x32x32xf32, #tpu.memory_space<vmem>>, vector<1x32x32xf32>
    %133 = vector.shape_cast %132 : vector<1x32x32xf32> to vector<32x32xf32>
    %cst_49 = arith.constant dense<0.000000e+00> : vector<16x32xf32>
    %134 = tpu.matmul %131, %133, %cst_49 {dimension_numbers = #tpu.dot_dimension_numbers<[1], [0], [0], [1], [0, 0, 1, 1], [], []>} : vector<16x32xf32>, vector<32x32xf32>, vector<16x32xf32> -> vector<16x32xf32>
    %135 = vector.broadcast %55 : vector<1x32xf32> to vector<16x32xf32>
    %136 = arith.addf %134, %135 : vector<16x32xf32>
    %137 = arith.addf %136, %33 : vector<16x32xf32>
    %cst_50 = arith.constant dense<0.000000e+00> : vector<16xf32>
    %138 = vector.multi_reduction <add>, %137, %cst_50 [1] : vector<16x32xf32> to vector<16xf32>
    %139 = vector.shape_cast %138 : vector<16xf32> to vector<16x1xf32>
    %cst_51 = arith.constant 3.200000e+01 : f32
    %140 = vector.broadcast %cst_51 : f32 to vector<16x1xf32>
    %141 = arith.divf %139, %140 : vector<16x1xf32>
    %142 = vector.broadcast %141 : vector<16x1xf32> to vector<16x32xf32>
    %143 = arith.subf %137, %142 : vector<16x32xf32>
    %144 = arith.mulf %143, %143 : vector<16x32xf32>
    %cst_52 = arith.constant dense<0.000000e+00> : vector<16xf32>
    %145 = vector.multi_reduction <add>, %144, %cst_52 [1] : vector<16x32xf32> to vector<16xf32>
    %146 = vector.shape_cast %145 : vector<16xf32> to vector<16x1xf32>
    %cst_53 = arith.constant 3.200000e+01 : f32
    %147 = vector.broadcast %cst_53 : f32 to vector<16x1xf32>
    %148 = arith.divf %146, %147 : vector<16x1xf32>
    %149 = vector.broadcast %141 : vector<16x1xf32> to vector<16x32xf32>
    %150 = arith.subf %137, %149 : vector<16x32xf32>
    %cst_54 = arith.constant 9.99999996E-13 : f32
    %151 = vector.broadcast %cst_54 : f32 to vector<16x1xf32>
    %152 = arith.addf %148, %151 : vector<16x1xf32>
    %153 = math.rsqrt %152 : vector<16x1xf32>
    %154 = vector.broadcast %153 : vector<16x1xf32> to vector<16x32xf32>
    %155 = arith.mulf %150, %154 : vector<16x32xf32>
    %156 = vector.broadcast %56 : vector<1x32xf32> to vector<16x32xf32>
    %157 = arith.mulf %155, %156 : vector<16x32xf32>
    %158 = vector.broadcast %57 : vector<1x32xf32> to vector<16x32xf32>
    %159 = arith.addf %157, %158 : vector<16x32xf32>
    %c0_55 = arith.constant 0 : index
    %c0_56 = arith.constant 0 : index
    %c0_57 = arith.constant 0 : index
    %160 = vector.load %arg8[%c0_55, %c0_56, %c0_57] : memref<2x32x64xf32, #tpu.memory_space<vmem>>, vector<1x32x64xf32>
    %161 = vector.shape_cast %160 : vector<1x32x64xf32> to vector<32x64xf32>
    %cst_58 = arith.constant dense<0.000000e+00> : vector<16x64xf32>
    %162 = tpu.matmul %159, %161, %cst_58 {dimension_numbers = #tpu.dot_dimension_numbers<[1], [0], [0], [1], [0, 0, 1, 1], [], []>} : vector<16x32xf32>, vector<32x64xf32>, vector<16x64xf32> -> vector<16x64xf32>
    %c0_59 = arith.constant 0 : index
    %c0_60 = arith.constant 0 : index
    %c0_61 = arith.constant 0 : index
    %163 = vector.load %arg9[%c0_59, %c0_60, %c0_61] : memref<2x1x64xf32, #tpu.memory_space<vmem>>, vector<1x1x64xf32>
    %164 = vector.shape_cast %163 : vector<1x1x64xf32> to vector<1x64xf32>
    %165 = vector.broadcast %164 : vector<1x64xf32> to vector<16x64xf32>
    %166 = arith.addf %162, %165 : vector<16x64xf32>
    %cst_62 = arith.constant 5.000000e-01 : f32
    %167 = vector.broadcast %cst_62 : f32 to vector<16x64xf32>
    %168 = arith.mulf %167, %166 : vector<16x64xf32>
    %cst_63 = arith.constant 1.41421354 : f32
    %169 = vector.broadcast %cst_63 : f32 to vector<16x64xf32>
    %170 = arith.divf %166, %169 : vector<16x64xf32>
    %171 = math.erf %170 : vector<16x64xf32>
    %cst_64 = arith.constant 1.000000e+00 : f32
    %172 = vector.broadcast %cst_64 : f32 to vector<16x64xf32>
    %173 = arith.addf %172, %171 : vector<16x64xf32>
    %174 = arith.mulf %168, %173 : vector<16x64xf32>
    %c0_65 = arith.constant 0 : index
    %c0_66 = arith.constant 0 : index
    %c0_67 = arith.constant 0 : index
    %175 = vector.load %arg10[%c0_65, %c0_66, %c0_67] : memref<2x64x32xf32, #tpu.memory_space<vmem>>, vector<1x64x32xf32>
    %176 = vector.shape_cast %175 : vector<1x64x32xf32> to vector<64x32xf32>
    %cst_68 = arith.constant dense<0.000000e+00> : vector<16x32xf32>
    %177 = tpu.matmul %174, %176, %cst_68 {dimension_numbers = #tpu.dot_dimension_numbers<[1], [0], [0], [1], [0, 0, 1, 1], [], []>} : vector<16x64xf32>, vector<64x32xf32>, vector<16x32xf32> -> vector<16x32xf32>
    %178 = vector.broadcast %58 : vector<1x32xf32> to vector<16x32xf32>
    %179 = arith.addf %177, %178 : vector<16x32xf32>
    %180 = arith.addf %179, %159 : vector<16x32xf32>
    %cst_69 = arith.constant dense<0.000000e+00> : vector<16xf32>
    %181 = vector.multi_reduction <add>, %180, %cst_69 [1] : vector<16x32xf32> to vector<16xf32>
    %182 = vector.shape_cast %181 : vector<16xf32> to vector<16x1xf32>
    %cst_70 = arith.constant 3.200000e+01 : f32
    %183 = vector.broadcast %cst_70 : f32 to vector<16x1xf32>
    %184 = arith.divf %182, %183 : vector<16x1xf32>
    %185 = vector.broadcast %184 : vector<16x1xf32> to vector<16x32xf32>
    %186 = arith.subf %180, %185 : vector<16x32xf32>
    %187 = arith.mulf %186, %186 : vector<16x32xf32>
    %cst_71 = arith.constant dense<0.000000e+00> : vector<16xf32>
    %188 = vector.multi_reduction <add>, %187, %cst_71 [1] : vector<16x32xf32> to vector<16xf32>
    %189 = vector.shape_cast %188 : vector<16xf32> to vector<16x1xf32>
    %cst_72 = arith.constant 3.200000e+01 : f32
    %190 = vector.broadcast %cst_72 : f32 to vector<16x1xf32>
    %191 = arith.divf %189, %190 : vector<16x1xf32>
    %192 = vector.broadcast %184 : vector<16x1xf32> to vector<16x32xf32>
    %193 = arith.subf %180, %192 : vector<16x32xf32>
    %cst_73 = arith.constant 9.99999996E-13 : f32
    %194 = vector.broadcast %cst_73 : f32 to vector<16x1xf32>
    %195 = arith.addf %191, %194 : vector<16x1xf32>
    %196 = math.rsqrt %195 : vector<16x1xf32>
    %197 = vector.broadcast %196 : vector<16x1xf32> to vector<16x32xf32>
    %198 = arith.mulf %193, %197 : vector<16x32xf32>
    %199 = vector.broadcast %59 : vector<1x32xf32> to vector<16x32xf32>
    %200 = arith.mulf %198, %199 : vector<16x32xf32>
    %201 = vector.broadcast %60 : vector<1x32xf32> to vector<16x32xf32>
    %202 = arith.addf %200, %201 : vector<16x32xf32>
    %c1_74 = arith.constant 1 : index
    %c0_75 = arith.constant 0 : index
    %c0_76 = arith.constant 0 : index
    %203 = vector.load %arg11[%c1_74, %c0_75, %c0_76] : memref<2x6x32xf32, #tpu.memory_space<vmem>>, vector<1x6x32xf32>
    %204 = vector.shape_cast %203 : vector<1x6x32xf32> to vector<6x32xf32>
    %205 = vector.extract_strided_slice %204 {offsets = [0, 0], sizes = [1, 32], strides = [1, 1]} : vector<6x32xf32> to vector<1x32xf32>
    %206 = vector.extract_strided_slice %204 {offsets = [1, 0], sizes = [1, 32], strides = [1, 1]} : vector<6x32xf32> to vector<1x32xf32>
    %207 = vector.extract_strided_slice %204 {offsets = [2, 0], sizes = [1, 32], strides = [1, 1]} : vector<6x32xf32> to vector<1x32xf32>
    %208 = vector.extract_strided_slice %204 {offsets = [3, 0], sizes = [1, 32], strides = [1, 1]} : vector<6x32xf32> to vector<1x32xf32>
    %209 = vector.extract_strided_slice %204 {offsets = [4, 0], sizes = [1, 32], strides = [1, 1]} : vector<6x32xf32> to vector<1x32xf32>
    %210 = vector.extract_strided_slice %204 {offsets = [5, 0], sizes = [1, 32], strides = [1, 1]} : vector<6x32xf32> to vector<1x32xf32>
    %c1_77 = arith.constant 1 : index
    %c0_78 = arith.constant 0 : index
    %c0_79 = arith.constant 0 : index
    %211 = vector.load %arg5[%c1_77, %c0_78, %c0_79] : memref<2x32x96xf32, #tpu.memory_space<vmem>>, vector<1x32x96xf32>
    %212 = vector.shape_cast %211 : vector<1x32x96xf32> to vector<32x96xf32>
    %cst_80 = arith.constant dense<0.000000e+00> : vector<16x96xf32>
    %213 = tpu.matmul %202, %212, %cst_80 {dimension_numbers = #tpu.dot_dimension_numbers<[1], [0], [0], [1], [0, 0, 1, 1], [], []>} : vector<16x32xf32>, vector<32x96xf32>, vector<16x96xf32> -> vector<16x96xf32>
    %c1_81 = arith.constant 1 : index
    %c0_82 = arith.constant 0 : index
    %c0_83 = arith.constant 0 : index
    %214 = vector.load %arg6[%c1_81, %c0_82, %c0_83] : memref<2x1x96xf32, #tpu.memory_space<vmem>>, vector<1x1x96xf32>
    %215 = vector.shape_cast %214 : vector<1x1x96xf32> to vector<1x96xf32>
    %216 = vector.broadcast %215 : vector<1x96xf32> to vector<16x96xf32>
    %217 = arith.addf %213, %216 : vector<16x96xf32>
    %218 = vector.extract_strided_slice %217 {offsets = [0, 0], sizes = [16, 32], strides = [1, 1]} : vector<16x96xf32> to vector<16x32xf32>
    %219 = vector.extract_strided_slice %217 {offsets = [0, 32], sizes = [16, 32], strides = [1, 1]} : vector<16x96xf32> to vector<16x32xf32>
    %220 = vector.extract_strided_slice %217 {offsets = [0, 64], sizes = [16, 32], strides = [1, 1]} : vector<16x96xf32> to vector<16x32xf32>
    %221 = vector.extract_strided_slice %218 {offsets = [0, 0], sizes = [16, 8], strides = [1, 1]} : vector<16x32xf32> to vector<16x8xf32>
    %222 = vector.extract_strided_slice %219 {offsets = [0, 0], sizes = [16, 8], strides = [1, 1]} : vector<16x32xf32> to vector<16x8xf32>
    %cst_84 = arith.constant dense<0.000000e+00> : vector<16x16xf32>
    %223 = tpu.matmul %221, %222, %cst_84 {dimension_numbers = #tpu.dot_dimension_numbers<[1], [1], [0], [0], [0, 0, 1, 0], [], []>} : vector<16x8xf32>, vector<16x8xf32>, vector<16x16xf32> -> vector<16x16xf32>
    %224 = arith.addf %223, %52 : vector<16x16xf32>
    %cst_85 = arith.constant dense<0xFF800000> : vector<16xf32>
    %225 = vector.multi_reduction <maximumf>, %224, %cst_85 [1] : vector<16x16xf32> to vector<16xf32>
    %226 = vector.shape_cast %225 : vector<16xf32> to vector<16x1xf32>
    %227 = vector.broadcast %226 : vector<16x1xf32> to vector<16x16xf32>
    %228 = arith.subf %224, %227 : vector<16x16xf32>
    %229 = math.exp %228 : vector<16x16xf32>
    %cst_86 = arith.constant dense<0.000000e+00> : vector<16xf32>
    %230 = vector.multi_reduction <add>, %229, %cst_86 [1] : vector<16x16xf32> to vector<16xf32>
    %231 = vector.shape_cast %230 : vector<16xf32> to vector<16x1xf32>
    %232 = vector.broadcast %231 : vector<16x1xf32> to vector<16x16xf32>
    %233 = arith.divf %229, %232 : vector<16x16xf32>
    %234 = vector.extract_strided_slice %220 {offsets = [0, 0], sizes = [16, 8], strides = [1, 1]} : vector<16x32xf32> to vector<16x8xf32>
    %cst_87 = arith.constant dense<0.000000e+00> : vector<16x8xf32>
    %235 = tpu.matmul %233, %234, %cst_87 {dimension_numbers = #tpu.dot_dimension_numbers<[1], [0], [0], [1], [0, 0, 1, 1], [], []>} : vector<16x16xf32>, vector<16x8xf32>, vector<16x8xf32> -> vector<16x8xf32>
    %236 = vector.extract_strided_slice %218 {offsets = [0, 8], sizes = [16, 8], strides = [1, 1]} : vector<16x32xf32> to vector<16x8xf32>
    %237 = vector.extract_strided_slice %219 {offsets = [0, 8], sizes = [16, 8], strides = [1, 1]} : vector<16x32xf32> to vector<16x8xf32>
    %cst_88 = arith.constant dense<0.000000e+00> : vector<16x16xf32>
    %238 = tpu.matmul %236, %237, %cst_88 {dimension_numbers = #tpu.dot_dimension_numbers<[1], [1], [0], [0], [0, 0, 1, 0], [], []>} : vector<16x8xf32>, vector<16x8xf32>, vector<16x16xf32> -> vector<16x16xf32>
    %239 = arith.addf %238, %52 : vector<16x16xf32>
    %cst_89 = arith.constant dense<0xFF800000> : vector<16xf32>
    %240 = vector.multi_reduction <maximumf>, %239, %cst_89 [1] : vector<16x16xf32> to vector<16xf32>
    %241 = vector.shape_cast %240 : vector<16xf32> to vector<16x1xf32>
    %242 = vector.broadcast %241 : vector<16x1xf32> to vector<16x16xf32>
    %243 = arith.subf %239, %242 : vector<16x16xf32>
    %244 = math.exp %243 : vector<16x16xf32>
    %cst_90 = arith.constant dense<0.000000e+00> : vector<16xf32>
    %245 = vector.multi_reduction <add>, %244, %cst_90 [1] : vector<16x16xf32> to vector<16xf32>
    %246 = vector.shape_cast %245 : vector<16xf32> to vector<16x1xf32>
    %247 = vector.broadcast %246 : vector<16x1xf32> to vector<16x16xf32>
    %248 = arith.divf %244, %247 : vector<16x16xf32>
    %249 = vector.extract_strided_slice %220 {offsets = [0, 8], sizes = [16, 8], strides = [1, 1]} : vector<16x32xf32> to vector<16x8xf32>
    %cst_91 = arith.constant dense<0.000000e+00> : vector<16x8xf32>
    %250 = tpu.matmul %248, %249, %cst_91 {dimension_numbers = #tpu.dot_dimension_numbers<[1], [0], [0], [1], [0, 0, 1, 1], [], []>} : vector<16x16xf32>, vector<16x8xf32>, vector<16x8xf32> -> vector<16x8xf32>
    %251 = vector.extract_strided_slice %218 {offsets = [0, 16], sizes = [16, 8], strides = [1, 1]} : vector<16x32xf32> to vector<16x8xf32>
    %252 = vector.extract_strided_slice %219 {offsets = [0, 16], sizes = [16, 8], strides = [1, 1]} : vector<16x32xf32> to vector<16x8xf32>
    %cst_92 = arith.constant dense<0.000000e+00> : vector<16x16xf32>
    %253 = tpu.matmul %251, %252, %cst_92 {dimension_numbers = #tpu.dot_dimension_numbers<[1], [1], [0], [0], [0, 0, 1, 0], [], []>} : vector<16x8xf32>, vector<16x8xf32>, vector<16x16xf32> -> vector<16x16xf32>
    %254 = arith.addf %253, %52 : vector<16x16xf32>
    %cst_93 = arith.constant dense<0xFF800000> : vector<16xf32>
    %255 = vector.multi_reduction <maximumf>, %254, %cst_93 [1] : vector<16x16xf32> to vector<16xf32>
    %256 = vector.shape_cast %255 : vector<16xf32> to vector<16x1xf32>
    %257 = vector.broadcast %256 : vector<16x1xf32> to vector<16x16xf32>
    %258 = arith.subf %254, %257 : vector<16x16xf32>
    %259 = math.exp %258 : vector<16x16xf32>
    %cst_94 = arith.constant dense<0.000000e+00> : vector<16xf32>
    %260 = vector.multi_reduction <add>, %259, %cst_94 [1] : vector<16x16xf32> to vector<16xf32>
    %261 = vector.shape_cast %260 : vector<16xf32> to vector<16x1xf32>
    %262 = vector.broadcast %261 : vector<16x1xf32> to vector<16x16xf32>
    %263 = arith.divf %259, %262 : vector<16x16xf32>
    %264 = vector.extract_strided_slice %220 {offsets = [0, 16], sizes = [16, 8], strides = [1, 1]} : vector<16x32xf32> to vector<16x8xf32>
    %cst_95 = arith.constant dense<0.000000e+00> : vector<16x8xf32>
    %265 = tpu.matmul %263, %264, %cst_95 {dimension_numbers = #tpu.dot_dimension_numbers<[1], [0], [0], [1], [0, 0, 1, 1], [], []>} : vector<16x16xf32>, vector<16x8xf32>, vector<16x8xf32> -> vector<16x8xf32>
    %266 = vector.extract_strided_slice %218 {offsets = [0, 24], sizes = [16, 8], strides = [1, 1]} : vector<16x32xf32> to vector<16x8xf32>
    %267 = vector.extract_strided_slice %219 {offsets = [0, 24], sizes = [16, 8], strides = [1, 1]} : vector<16x32xf32> to vector<16x8xf32>
    %cst_96 = arith.constant dense<0.000000e+00> : vector<16x16xf32>
    %268 = tpu.matmul %266, %267, %cst_96 {dimension_numbers = #tpu.dot_dimension_numbers<[1], [1], [0], [0], [0, 0, 1, 0], [], []>} : vector<16x8xf32>, vector<16x8xf32>, vector<16x16xf32> -> vector<16x16xf32>
    %269 = arith.addf %268, %52 : vector<16x16xf32>
    %cst_97 = arith.constant dense<0xFF800000> : vector<16xf32>
    %270 = vector.multi_reduction <maximumf>, %269, %cst_97 [1] : vector<16x16xf32> to vector<16xf32>
    %271 = vector.shape_cast %270 : vector<16xf32> to vector<16x1xf32>
    %272 = vector.broadcast %271 : vector<16x1xf32> to vector<16x16xf32>
    %273 = arith.subf %269, %272 : vector<16x16xf32>
    %274 = math.exp %273 : vector<16x16xf32>
    %cst_98 = arith.constant dense<0.000000e+00> : vector<16xf32>
    %275 = vector.multi_reduction <add>, %274, %cst_98 [1] : vector<16x16xf32> to vector<16xf32>
    %276 = vector.shape_cast %275 : vector<16xf32> to vector<16x1xf32>
    %277 = vector.broadcast %276 : vector<16x1xf32> to vector<16x16xf32>
    %278 = arith.divf %274, %277 : vector<16x16xf32>
    %279 = vector.extract_strided_slice %220 {offsets = [0, 24], sizes = [16, 8], strides = [1, 1]} : vector<16x32xf32> to vector<16x8xf32>
    %cst_99 = arith.constant dense<0.000000e+00> : vector<16x8xf32>
    %280 = tpu.matmul %278, %279, %cst_99 {dimension_numbers = #tpu.dot_dimension_numbers<[1], [0], [0], [1], [0, 0, 1, 1], [], []>} : vector<16x16xf32>, vector<16x8xf32>, vector<16x8xf32> -> vector<16x8xf32>
    %281 = tpu.concatenate %235, %250, %265, %280 in 1 : vector<16x8xf32>, vector<16x8xf32>, vector<16x8xf32>, vector<16x8xf32> -> vector<16x32xf32>
    %c1_100 = arith.constant 1 : index
    %c0_101 = arith.constant 0 : index
    %c0_102 = arith.constant 0 : index
    %282 = vector.load %arg7[%c1_100, %c0_101, %c0_102] : memref<2x32x32xf32, #tpu.memory_space<vmem>>, vector<1x32x32xf32>
    %283 = vector.shape_cast %282 : vector<1x32x32xf32> to vector<32x32xf32>
    %cst_103 = arith.constant dense<0.000000e+00> : vector<16x32xf32>
    %284 = tpu.matmul %281, %283, %cst_103 {dimension_numbers = #tpu.dot_dimension_numbers<[1], [0], [0], [1], [0, 0, 1, 1], [], []>} : vector<16x32xf32>, vector<32x32xf32>, vector<16x32xf32> -> vector<16x32xf32>
    %285 = vector.broadcast %205 : vector<1x32xf32> to vector<16x32xf32>
    %286 = arith.addf %284, %285 : vector<16x32xf32>
    %287 = arith.addf %286, %202 : vector<16x32xf32>
    %cst_104 = arith.constant dense<0.000000e+00> : vector<16xf32>
    %288 = vector.multi_reduction <add>, %287, %cst_104 [1] : vector<16x32xf32> to vector<16xf32>
    %289 = vector.shape_cast %288 : vector<16xf32> to vector<16x1xf32>
    %cst_105 = arith.constant 3.200000e+01 : f32
    %290 = vector.broadcast %cst_105 : f32 to vector<16x1xf32>
    %291 = arith.divf %289, %290 : vector<16x1xf32>
    %292 = vector.broadcast %291 : vector<16x1xf32> to vector<16x32xf32>
    %293 = arith.subf %287, %292 : vector<16x32xf32>
    %294 = arith.mulf %293, %293 : vector<16x32xf32>
    %cst_106 = arith.constant dense<0.000000e+00> : vector<16xf32>
    %295 = vector.multi_reduction <add>, %294, %cst_106 [1] : vector<16x32xf32> to vector<16xf32>
    %296 = vector.shape_cast %295 : vector<16xf32> to vector<16x1xf32>
    %cst_107 = arith.constant 3.200000e+01 : f32
    %297 = vector.broadcast %cst_107 : f32 to vector<16x1xf32>
    %298 = arith.divf %296, %297 : vector<16x1xf32>
    %299 = vector.broadcast %291 : vector<16x1xf32> to vector<16x32xf32>
    %300 = arith.subf %287, %299 : vector<16x32xf32>
    %cst_108 = arith.constant 9.99999996E-13 : f32
    %301 = vector.broadcast %cst_108 : f32 to vector<16x1xf32>
    %302 = arith.addf %298, %301 : vector<16x1xf32>
    %303 = math.rsqrt %302 : vector<16x1xf32>
    %304 = vector.broadcast %303 : vector<16x1xf32> to vector<16x32xf32>
    %305 = arith.mulf %300, %304 : vector<16x32xf32>
    %306 = vector.broadcast %206 : vector<1x32xf32> to vector<16x32xf32>
    %307 = arith.mulf %305, %306 : vector<16x32xf32>
    %308 = vector.broadcast %207 : vector<1x32xf32> to vector<16x32xf32>
    %309 = arith.addf %307, %308 : vector<16x32xf32>
    %c1_109 = arith.constant 1 : index
    %c0_110 = arith.constant 0 : index
    %c0_111 = arith.constant 0 : index
    %310 = vector.load %arg8[%c1_109, %c0_110, %c0_111] : memref<2x32x64xf32, #tpu.memory_space<vmem>>, vector<1x32x64xf32>
    %311 = vector.shape_cast %310 : vector<1x32x64xf32> to vector<32x64xf32>
    %cst_112 = arith.constant dense<0.000000e+00> : vector<16x64xf32>
    %312 = tpu.matmul %309, %311, %cst_112 {dimension_numbers = #tpu.dot_dimension_numbers<[1], [0], [0], [1], [0, 0, 1, 1], [], []>} : vector<16x32xf32>, vector<32x64xf32>, vector<16x64xf32> -> vector<16x64xf32>
    %c1_113 = arith.constant 1 : index
    %c0_114 = arith.constant 0 : index
    %c0_115 = arith.constant 0 : index
    %313 = vector.load %arg9[%c1_113, %c0_114, %c0_115] : memref<2x1x64xf32, #tpu.memory_space<vmem>>, vector<1x1x64xf32>
    %314 = vector.shape_cast %313 : vector<1x1x64xf32> to vector<1x64xf32>
    %315 = vector.broadcast %314 : vector<1x64xf32> to vector<16x64xf32>
    %316 = arith.addf %312, %315 : vector<16x64xf32>
    %cst_116 = arith.constant 5.000000e-01 : f32
    %317 = vector.broadcast %cst_116 : f32 to vector<16x64xf32>
    %318 = arith.mulf %317, %316 : vector<16x64xf32>
    %cst_117 = arith.constant 1.41421354 : f32
    %319 = vector.broadcast %cst_117 : f32 to vector<16x64xf32>
    %320 = arith.divf %316, %319 : vector<16x64xf32>
    %321 = math.erf %320 : vector<16x64xf32>
    %cst_118 = arith.constant 1.000000e+00 : f32
    %322 = vector.broadcast %cst_118 : f32 to vector<16x64xf32>
    %323 = arith.addf %322, %321 : vector<16x64xf32>
    %324 = arith.mulf %318, %323 : vector<16x64xf32>
    %c1_119 = arith.constant 1 : index
    %c0_120 = arith.constant 0 : index
    %c0_121 = arith.constant 0 : index
    %325 = vector.load %arg10[%c1_119, %c0_120, %c0_121] : memref<2x64x32xf32, #tpu.memory_space<vmem>>, vector<1x64x32xf32>
    %326 = vector.shape_cast %325 : vector<1x64x32xf32> to vector<64x32xf32>
    %cst_122 = arith.constant dense<0.000000e+00> : vector<16x32xf32>
    %327 = tpu.matmul %324, %326, %cst_122 {dimension_numbers = #tpu.dot_dimension_numbers<[1], [0], [0], [1], [0, 0, 1, 1], [], []>} : vector<16x64xf32>, vector<64x32xf32>, vector<16x32xf32> -> vector<16x32xf32>
    %328 = vector.broadcast %208 : vector<1x32xf32> to vector<16x32xf32>
    %329 = arith.addf %327, %328 : vector<16x32xf32>
    %330 = arith.addf %329, %309 : vector<16x32xf32>
    %cst_123 = arith.constant dense<0.000000e+00> : vector<16xf32>
    %331 = vector.multi_reduction <add>, %330, %cst_123 [1] : vector<16x32xf32> to vector<16xf32>
    %332 = vector.shape_cast %331 : vector<16xf32> to vector<16x1xf32>
    %cst_124 = arith.constant 3.200000e+01 : f32
    %333 = vector.broadcast %cst_124 : f32 to vector<16x1xf32>
    %334 = arith.divf %332, %333 : vector<16x1xf32>
    %335 = vector.broadcast %334 : vector<16x1xf32> to vector<16x32xf32>
    %336 = arith.subf %330, %335 : vector<16x32xf32>
    %337 = arith.mulf %336, %336 : vector<16x32xf32>
    %cst_125 = arith.constant dense<0.000000e+00> : vector<16xf32>
    %338 = vector.multi_reduction <add>, %337, %cst_125 [1] : vector<16x32xf32> to vector<16xf32>
    %339 = vector.shape_cast %338 : vector<16xf32> to vector<16x1xf32>
    %cst_126 = arith.constant 3.200000e+01 : f32
    %340 = vector.broadcast %cst_126 : f32 to vector<16x1xf32>
    %341 = arith.divf %339, %340 : vector<16x1xf32>
    %342 = vector.broadcast %334 : vector<16x1xf32> to vector<16x32xf32>
    %343 = arith.subf %330, %342 : vector<16x32xf32>
    %cst_127 = arith.constant 9.99999996E-13 : f32
    %344 = vector.broadcast %cst_127 : f32 to vector<16x1xf32>
    %345 = arith.addf %341, %344 : vector<16x1xf32>
    %346 = math.rsqrt %345 : vector<16x1xf32>
    %347 = vector.broadcast %346 : vector<16x1xf32> to vector<16x32xf32>
    %348 = arith.mulf %343, %347 : vector<16x32xf32>
    %349 = vector.broadcast %209 : vector<1x32xf32> to vector<16x32xf32>
    %350 = arith.mulf %348, %349 : vector<16x32xf32>
    %351 = vector.broadcast %210 : vector<1x32xf32> to vector<16x32xf32>
    %352 = arith.addf %350, %351 : vector<16x32xf32>
    %353 = vector.shape_cast %352 : vector<16x32xf32> to vector<2x8x32xf32>
    %c0_128 = arith.constant 0 : index
    %c0_129 = arith.constant 0 : index
    %c0_130 = arith.constant 0 : index
    %354 = vector.load %arg13[%c0_128, %c0_129, %c0_130] : memref<2x8x32xf32, #tpu.memory_space<vmem>>, vector<2x8x32xf32>
    tpu.vector_store %arg13[%c0_128, %c0_129, %c0_130], %353 {strides = array<i32>} : memref<2x8x32xf32, #tpu.memory_space<vmem>>, vector<2x8x32xf32>,
    %355 = vector.extract_strided_slice %353 {offsets = [0, 0, 0], sizes = [2, 1, 32], strides = [1, 1, 1]} : vector<2x8x32xf32> to vector<2x1x32xf32>
    %356 = vector.shape_cast %355 : vector<2x1x32xf32> to vector<2x32xf32>
    %c0_131 = arith.constant 0 : index
    %c0_132 = arith.constant 0 : index
    %357 = vector.load %arg12[%c0_131, %c0_132] : memref<32x32xf32, #tpu.memory_space<vmem>>, vector<32x32xf32>
    %cst_133 = arith.constant dense<0.000000e+00> : vector<2x32xf32>
    %358 = tpu.matmul %356, %357, %cst_133 {dimension_numbers = #tpu.dot_dimension_numbers<[1], [0], [0], [1], [0, 0, 1, 1], [], []>} : vector<2x32xf32>, vector<32x32xf32>, vector<2x32xf32> -> vector<2x32xf32>
    %c2 = arith.constant 2 : index
    %c0_134 = arith.constant 0 : index
    %359 = vector.load %arg4[%c2, %c0_134] : memref<3x32xf32, #tpu.memory_space<vmem>>, vector<1x32xf32>
    %360 = vector.broadcast %359 : vector<1x32xf32> to vector<2x32xf32>
    %361 = arith.addf %358, %360 : vector<2x32xf32>
    %362 = math.tanh %361 : vector<2x32xf32>
    %c0_135 = arith.constant 0 : index
    %c0_136 = arith.constant 0 : index
    %363 = vector.load %arg14[%c0_135, %c0_136] : memref<2x32xf32, #tpu.memory_space<vmem>>, vector<2x32xf32>
    tpu.vector_store %arg14[%c0_135, %c0_136], %362 {strides = array<i32>} : memref<2x32xf32, #tpu.memory_space<vmem>>, vector<2x32xf32>,
    return
  }
}

</mosaic_0001>

<llo_original>
// kernel: tpu_custom_call.1
$region0: #{tpu_custom_call.1}
  #allocation0 [shape = 'u32[]', space=smem, size = 0x4, offset = 0x4, fixed_abs, tag = 'smem constant byte address 0x4 - core index']
  #allocation1 [shape = 'u32[72,128]{1,0:T(1,128)}', space=vmem, size = 0x9000, scoped, tag = 'internal scratch']
  %s0 = inlined_call_operand.vmem [shape: s32[16,1], index: 0, kind: input, shape index: {}]
  %s1 = inlined_call_operand.vmem [shape: f32[1,16], index: 1, kind: input, shape index: {}]
  %s2 = inlined_call_operand.vmem [shape: f32[128,32], index: 2, kind: input, shape index: {}]
  %s3 = inlined_call_operand.vmem [shape: f32[16,32], index: 3, kind: input, shape index: {}]
  %s4 = inlined_call_operand.vmem [shape: f32[3,32], index: 4, kind: input, shape index: {}]
  %s5 = inlined_call_operand.vmem [shape: f32[2,32,96], index: 5, kind: input, shape index: {}]
  %s6 = inlined_call_operand.vmem [shape: f32[2,1,96], index: 6, kind: input, shape index: {}]
  %s7 = inlined_call_operand.vmem [shape: f32[2,32,32], index: 7, kind: input, shape index: {}]
  %s8 = inlined_call_operand.vmem [shape: f32[2,32,64], index: 8, kind: input, shape index: {}]
  %s9 = inlined_call_operand.vmem [shape: f32[2,1,64], index: 9, kind: input, shape index: {}]
  %s10 = inlined_call_operand.vmem [shape: f32[2,64,32], index: 10, kind: input, shape index: {}]
  %s11 = inlined_call_operand.vmem [shape: f32[2,6,32], index: 11, kind: input, shape index: {}]
  %s12 = inlined_call_operand.vmem [shape: f32[32,32], index: 12, kind: input, shape index: {}]
  %s13 = inlined_call_operand.hbm [shape: f32[2,8,32], index: 13, kind: output, shape index: {0}]
  %s14 = inlined_call_operand.hbm [shape: f32[2,32], index: 14, kind: output, shape index: {1}]
  %15 = xla_tuple %s13, %s14
  %s16 = sld [smem:[#allocation0]]
  $region70: #{tpu_custom_call.1} parent=0
    _
  %s18 = ssub.s32 1, %s16
  %s19 = scalar_select 0, %s18, %s16
  $region1: #{tpu_custom_call.1} parent=0
    #allocation2 [shape = 'u8[8192]{0}', space=vmem, size = 0x2000, scoped, tag = 'output window, operand 0, single buffered']
    #allocation3 [shape = 's32[1]{0}', space=sflag, size = 0x4, scoped, tag = 'scoped memory for tpu_custom_call.1']
    #allocation4 [shape = 'u8[1024]{0}', space=vmem, size = 0x400, scoped, tag = 'output window, operand 1, single buffered']
    #allocation5 [shape = 's32[1]{0}', space=sflag, size = 0x4, scoped, tag = 'scoped memory for tpu_custom_call.1']
    %20 = vsyncpa [#allocation3], 0
    %21 = vsyncpa [#allocation5], 0
    // Predicated region
    $region2: #{tpu_custom_call.1} parent=1 // pred_check
      _
    $region3: #{tpu_custom_call.1} parent=1 // pred_check_branch
      %23 = sbr.rel (0) target = $region5
    $region4: #{tpu_custom_call.1} parent=1 // pred_region
      _
    $region5: #{tpu_custom_call.1} parent=1 // pred_fallthru
      _
    // Predicated region
    $region6: #{tpu_custom_call.1} parent=1 // pred_check
      _
    $region7: #{tpu_custom_call.1} parent=1 // pred_check_branch
      %25 = sbr.rel (0) target = $region9
    $region8: #{tpu_custom_call.1} parent=1 // pred_region
      _
    $region9: #{tpu_custom_call.1} parent=1 // pred_fallthru
      _
    // Predicated region
    $region10: #{tpu_custom_call.1} parent=1 // pred_check
      _
    $region11: #{tpu_custom_call.1} parent=1 // pred_check_branch
      %27 = sbr.rel (0) target = $region13
    $region12: #{tpu_custom_call.1} parent=1 // pred_region
      _
    $region13: #{tpu_custom_call.1} parent=1 // pred_fallthru
      _
    // Predicated region
    $region14: #{tpu_custom_call.1} parent=1 // pred_check
      _
    $region15: #{tpu_custom_call.1} parent=1 // pred_check_branch
      %29 = sbr.rel (0) target = $region17
    $region16: #{tpu_custom_call.1} parent=1 // pred_region
      _
    $region17: #{tpu_custom_call.1} parent=1 // pred_fallthru
      _
    // Predicated region
    $region18: #{tpu_custom_call.1} parent=1 // pred_check
      _
    $region19: #{tpu_custom_call.1} parent=1 // pred_check_branch
      %31 = sbr.rel (0) target = $region21
    $region20: #{tpu_custom_call.1} parent=1 // pred_region
      _
    $region21: #{tpu_custom_call.1} parent=1 // pred_fallthru
      _
    // Predicated region
    $region22: #{tpu_custom_call.1} parent=1 // pred_check
      _
    $region23: #{tpu_custom_call.1} parent=1 // pred_check_branch
      %33 = sbr.rel (0) target = $region25
    $region24: #{tpu_custom_call.1} parent=1 // pred_region
      _
    $region25: #{tpu_custom_call.1} parent=1 // pred_fallthru
      _
    // Predicated region
    $region26: #{tpu_custom_call.1} parent=1 // pred_check
      _
    $region27: #{tpu_custom_call.1} parent=1 // pred_check_branch
      %35 = sbr.rel (0) target = $region29
    $region28: #{tpu_custom_call.1} parent=1 // pred_region
      _
    $region29: #{tpu_custom_call.1} parent=1 // pred_fallthru
      _
    // Predicated region
    $region30: #{tpu_custom_call.1} parent=1 // pred_check
      _
    $region31: #{tpu_custom_call.1} parent=1 // pred_check_branch
      %37 = sbr.rel (0) target = $region33
    $region32: #{tpu_custom_call.1} parent=1 // pred_region
      _
    $region33: #{tpu_custom_call.1} parent=1 // pred_fallthru
      _
    // Predicated region
    $region34: #{tpu_custom_call.1} parent=1 // pred_check
      _
    $region35: #{tpu_custom_call.1} parent=1 // pred_check_branch
      %39 = sbr.rel (0) target = $region37
    $region36: #{tpu_custom_call.1} parent=1 // pred_region
      _
    $region37: #{tpu_custom_call.1} parent=1 // pred_fallthru
      _
    // Predicated region
    $region38: #{tpu_custom_call.1} parent=1 // pred_check
      _
    $region39: #{tpu_custom_call.1} parent=1 // pred_check_branch
      %41 = sbr.rel (0) target = $region41
    $region40: #{tpu_custom_call.1} parent=1 // pred_region
      _
    $region41: #{tpu_custom_call.1} parent=1 // pred_fallthru
      _
    // Predicated region
    $region42: #{tpu_custom_call.1} parent=1 // pred_check
      _
    $region43: #{tpu_custom_call.1} parent=1 // pred_check_branch
      %43 = sbr.rel (0) target = $region45
    $region44: #{tpu_custom_call.1} parent=1 // pred_region
      _
    $region45: #{tpu_custom_call.1} parent=1 // pred_fallthru
      _
    // Predicated region
    $region46: #{tpu_custom_call.1} parent=1 // pred_check
      _
    $region47: #{tpu_custom_call.1} parent=1 // pred_check_branch
      %45 = sbr.rel (0) target = $region49
    $region48: #{tpu_custom_call.1} parent=1 // pred_region
      _
    $region49: #{tpu_custom_call.1} parent=1 // pred_fallthru
      _
    // Predicated region
    $region50: #{tpu_custom_call.1} parent=1 // pred_check
      _
    $region51: #{tpu_custom_call.1} parent=1 // pred_check_branch
      %47 = sbr.rel (0) target = $region53
    $region52: #{tpu_custom_call.1} parent=1 // pred_region
      _
    $region53: #{tpu_custom_call.1} parent=1 // pred_fallthru
      _
    %v48 = vld [vmem:[%s0] sm:$0xff]
    %v49 = vld [vmem:[%s0 + $0x8] sm:$0xff]
    %v50 = vlaneseq
    %v51 = vand.u32 %v50, 127
    %52 = vset.pattern.permute.xlu0 0
    %53 = vperm.xlu0 %52, %v48
    %v54 = vpop.permute.xlu0 %53
    %55 = vset.pattern.permute.xlu0 0
    %56 = vperm.xlu0 %55, %v49
    %v57 = vpop.permute.xlu0 %56
    %vm58 = vcmp.eq.s32.totalorder %v51, %v54
    %vm59 = vcmp.eq.s32.totalorder %v51, %v57
    %v60 = vsel %vm58, 1, 0
    %v61 = vsel %vm59, 1, 0
    %v62 = vcvt.s32.f32 %v60
    %v63 = vcvt.s32.f32 %v61
    %v64 = vld [vmem:[%s2] sm:$0xff]
    %v65 = vld [vmem:[%s2 + $0x8] sm:$0xff]
    %v66 = vld [vmem:[%s2 + $0x10] sm:$0xff]
    %v67 = vld [vmem:[%s2 + $0x18] sm:$0xff]
    %v68 = vld [vmem:[%s2 + $0x20] sm:$0xff]
    %v69 = vld [vmem:[%s2 + $0x28] sm:$0xff]
    %v70 = vld [vmem:[%s2 + $0x30] sm:$0xff]
    %v71 = vld [vmem:[%s2 + $0x38] sm:$0xff]
    %v72 = vld [vmem:[%s2 + $0x40] sm:$0xff]
    %v73 = vld [vmem:[%s2 + $0x48] sm:$0xff]
    %v74 = vld [vmem:[%s2 + $0x50] sm:$0xff]
    %v75 = vld [vmem:[%s2 + $0x58] sm:$0xff]
    %v76 = vld [vmem:[%s2 + $0x60] sm:$0xff]
    %v77 = vld [vmem:[%s2 + $0x68] sm:$0xff]
    %v78 = vld [vmem:[%s2 + $0x70] sm:$0xff]
    %v79 = vld [vmem:[%s2 + $0x78] sm:$0xff]
    %v80 = vld [vmem:[%s3] sm:$0xff]
    %v81 = vld [vmem:[%s3 + $0x8] sm:$0xff]
    %82 = vmatpush.msra.mxu0 %v79
    %83 = vmatpush.msra.mxu0 %v78
    %84 = vmatpush.msra.mxu0 %v77
    %85 = vmatpush.msra.mxu0 %v76
    %86 = vmatpush.msra.mxu0 %v75
    %87 = vmatpush.msra.mxu0 %v74
    %88 = vmatpush.msra.mxu0 %v73
    %89 = vmatpush.msra.mxu0 %v72
    %90 = vmatpush.msra.mxu0 %v71
    %91 = vmatpush.msra.mxu0 %v70
    %92 = vmatpush.msra.mxu0 %v69
    %93 = vmatpush.msra.mxu0 %v68
    %94 = vmatpush.msra.mxu0 %v67
    %95 = vmatpush.msra.mxu0 %v66
    %96 = vmatpush.msra.mxu0 %v65
    %97 = vmatpush.msra.mxu0 %v64
    %98 = vmatmul.f32.gmra.mxu0 %v62
    %v99 = vpop.f32.mrf.mxu0
    %v100 = vadd.f32 %v80, %v99
    %101 = vmatmul.f32.gmra.mxu0 %v63
    %v102 = vpop.f32.mrf.mxu0
    %v103 = vadd.f32 %v81, %v102
    %104 = vdwg.mxu0
    %v105 = vld [vmem:[%s4] sm:$0x1]
    %v106 = vld [vmem:[%s4 + $0x1] sm:$0x1]
    %vm107 = vcmask 261120
    %v108 = vsel %vm107, %v100, 0.0
    %109 = vadd.xlane.f32.xlu0 %v108
    %v110 = vpop.xlane.xlu0 %109
    %v111 = vsel %vm107, %v103, 0.0
    %112 = vadd.xlane.f32.xlu0 %v111
    %v113 = vpop.xlane.xlu0 %112
    %v114 = vrcp.pop 32.0
    %v115 = vmul.f32 32.0, %v114
    %v116 = vsub.f32 1.0, %v115
    %v117 = vmul.f32 %v114, %v116
    %v118 = vadd.f32 %v114, %v117
    %vm119 = vweird.f32 %v114
    %v120 = vsel %vm119, %v114, %v118
    %v121 = vmul.f32 %v110, %v120
    %v122 = vmul.f32 %v113, %v120
    %v123 = vsub.f32 %v100, %v121
    %v124 = vsub.f32 %v103, %v122
    %v125 = vmul.f32 %v123, %v123
    %v126 = vmul.f32 %v124, %v124
    %v127 = vsel %vm107, %v125, 0.0
    %128 = vadd.xlane.f32.xlu0 %v127
    %v129 = vpop.xlane.xlu0 %128
    %v130 = vsel %vm107, %v126, 0.0
    %131 = vadd.xlane.f32.xlu0 %v130
    %v132 = vpop.xlane.xlu0 %131
    %v133 = vmul.f32 %v129, %v120
    %v134 = vmul.f32 %v132, %v120
    %v135 = vadd.f32 %v133, 1e-12
    %v136 = vadd.f32 %v134, 1e-12
    %v137 = vrsqrt.pop %v135
    %v138 = vmul.f32 %v137, %v135
    %v139 = vmul.f32 %v138, %v137
    %v140 = vmul.f32 0.5, %v139
    %v141 = vsub.f32 1.5, %v140
    %v142 = vmul.f32 %v137, %v141
    %vm143 = vweird.f32 %v135
    %vm144 = vweird.f32 %v137
    %vm145 = vmor %vm143, %vm144
    %v146 = vsel %vm145, %v137, %v142
    %v147 = vrsqrt.pop %v136
    %v148 = vmul.f32 %v147, %v136
    %v149 = vmul.f32 %v148, %v147
    %v150 = vmul.f32 0.5, %v149
    %v151 = vsub.f32 1.5, %v150
    %v152 = vmul.f32 %v147, %v151
    %vm153 = vweird.f32 %v136
    %vm154 = vweird.f32 %v147
    %vm155 = vmor %vm153, %vm154
    %v156 = vsel %vm155, %v147, %v152
    %v157 = vmul.f32 %v123, %v146
    %v158 = vmul.f32 %v124, %v156
    %v159 = vperm.slane %v105, 0
    %v160 = vmul.f32 %v157, %v159
    %v161 = vmul.f32 %v158, %v159
    %v162 = vperm.slane %v106, 0
    %v163 = vadd.f32 %v160, %v162
    %v164 = vadd.f32 %v161, %v162
    %v165 = vlaneseq
    %v166 = vshrl.u32 %v165, 7
    %v167 = vadd.s32 %v166, 8
    %v168 = vcvt.s32.f32 %v166
    %v169 = vcvt.s32.f32 %v167
    %v170 = vcvt.s32.f32 %v51
    %v171 = vmul.f32 %v168, 0.125
    %v172 = vmul.f32 %v169, 0.125
    %v173 = vfloor.f32 %v171
    %v174 = vfloor.f32 %v172
    %v175 = vmul.f32 %v170, 0.125
    %v176 = vfloor.f32 %v175
    %vm177 = vcmp.eq.f32.partialorder %v173, %v176
    %vm178 = vcmp.eq.f32.partialorder %v174, %v176
    %v179 = vld [vmem:[%s1] sm:$0x1]
    %vm180 = vcmp.gt.f32.partialorder %v179, 0.0
    %v181 = vsel %vm180, 1, 0
    %v182 = vperm.slane %v181, 0
    %vm183 = vcmp.eq.s32.totalorder %v182, 1
    %vm184 = vmand %vm177, %vm183
    %vm185 = vmand %vm178, %vm183
    %v186 = vsel %vm184, 0.0, -1e+09
    %v187 = vsel %vm185, 0.0, -1e+09
    %v188 = vld [vmem:[%s11] sm:$0x3f]
    %v189 = vld [vmem:[%s5] sm:$0xff]
    %v190 = vld [vmem:[%s5 + $0x8] sm:$0xff]
    %v191 = vld [vmem:[%s5 + $0x10] sm:$0xff]
    %v192 = vld [vmem:[%s5 + $0x18] sm:$0xff]
    %v193 = vld [vmem:[%s6] sm:$0x1]
    %v195 = vperm.slane %v193, 0
    %v198 = vsel %vm107, %v163, 0
    %v201 = vsel %vm107, %v164, 0
    %203 = vmatpush.msra.mxu0 0.0
    %204 = vmatpush.msra.mxu0 0.0
    %205 = vmatpush.msra.mxu0 0.0
    %206 = vmatpush.msra.mxu0 0.0
    %207 = vmatpush.msra.mxu0 0.0
    %208 = vmatpush.msra.mxu0 0.0
    %209 = vmatpush.msra.mxu0 0.0
    %210 = vmatpush.msra.mxu0 0.0
    %211 = vmatpush.msra.mxu0 0.0
    %212 = vmatpush.msra.mxu0 0.0
    %213 = vmatpush.msra.mxu0 0.0
    %214 = vmatpush.msra.mxu0 0.0
    %215 = vmatpush.msra.mxu0 %v192
    %216 = vmatpush.msra.mxu0 %v191
    %217 = vmatpush.msra.mxu0 %v190
    %218 = vmatpush.msra.mxu0 %v189
    %219 = vmatmul.f32.gmra.mxu0 %v198
    %v220 = vpop.f32.mrf.mxu0
    %v221 = vadd.f32 %v195, %v220
    %222 = vmatmul.f32.gmra.mxu0 %v201
    %v223 = vpop.f32.mrf.mxu0
    %v224 = vadd.f32 %v195, %v223
    %225 = vdwg.mxu0
    %228 = vrot.lane.b32.xlu0 %v221, 96
    %v229 = vpop.permute.xlu0 %228
    %230 = vrot.lane.b32.xlu0 %v224, 96
    %v231 = vpop.permute.xlu0 %230
    %vm232 = vcmask 64512
    %v233 = vsel %vm232, %v221, 0
    %v235 = vsel %vm232, %v224, 0
    %v237 = vsel %vm232, %v229, 0
    %v239 = vsel %vm232, %v231, 0
    %241 = vmatpush.xpose.msra.mxu0 0.0
    %242 = vmatpush.xpose.msra.mxu0 0.0
    %243 = vmatpush.xpose.msra.mxu0 0.0
    %244 = vmatpush.xpose.msra.mxu0 0.0
    %245 = vmatpush.xpose.msra.mxu0 0.0
    %246 = vmatpush.xpose.msra.mxu0 0.0
    %247 = vmatpush.xpose.msra.mxu0 0.0
    %248 = vmatpush.xpose.msra.mxu0 0.0
    %249 = vmatpush.xpose.msra.mxu0 0.0
    %250 = vmatpush.xpose.msra.mxu0 0.0
    %251 = vmatpush.xpose.msra.mxu0 0.0
    %252 = vmatpush.xpose.msra.mxu0 0.0
    %253 = vmatpush.xpose.msra.mxu0 0.0
    %254 = vmatpush.xpose.msra.mxu0 0.0
    %255 = vmatpush.xpose.msra.mxu0 %v239
    %256 = vmatpush.xpose.msra.mxu0 %v237
    %257 = vmatmul.f32.gmra.mxu0 %v233
    %v258 = vpop.f32.mrf.mxu0
    %v259 = vadd.f32 %v186, %v258
    %260 = vmatmul.f32.gmra.mxu0 %v235
    %v261 = vpop.f32.mrf.mxu0
    %v262 = vadd.f32 %v187, %v261
    %263 = vdwg.mxu0
    %vm264 = vcmask 130048
    %v265 = vsel %vm264, %v259, -inf
    %266 = vmax.xlane.f32.xlu0 %v265
    %v267 = vpop.xlane.xlu0 %266
    %v268 = vsel %vm264, %v262, -inf
    %269 = vmax.xlane.f32.xlu0 %v268
    %v270 = vpop.xlane.xlu0 %269
    %v271 = vsub.f32 %v259, %v267
    %v272 = vsub.f32 %v262, %v270
    %v273 = vmul.f32 %v271, 1.442695
    %v274 = vpow.pop %v273
    %v275 = vmul.f32 %v272, 1.442695
    %v276 = vpow.pop %v275
    %v277 = vsel %vm264, %v274, 0.0
    %278 = vadd.xlane.f32.xlu0 %v277
    %v279 = vpop.xlane.xlu0 %278
    %v280 = vsel %vm264, %v276, 0.0
    %281 = vadd.xlane.f32.xlu0 %v280
    %v282 = vpop.xlane.xlu0 %281
    %v283 = vrcp.pop %v279
    %v284 = vmul.f32 %v279, %v283
    %v285 = vsub.f32 1.0, %v284
    %v286 = vmul.f32 %v283, %v285
    %v287 = vadd.f32 %v283, %v286
    %vm288 = vweird.f32 %v279
    %vm289 = vweird.f32 %v283
    %vm290 = vmor %vm288, %vm289
    %v291 = vsel %vm290, %v283, %v287
    %v292 = vand.u32 2147483647, %v279
    %vm293 = vcmp.eq.f32.partialorder %v292, 8.507059e+37
    %v294 = vand.u32 %v279, 2147483648
    %v295 = vor.u32 1.1754944e-38, %v294
    %v296 = vsel %vm293, %v295, %v291
    %v297 = vmul.f32 %v274, %v296
    %v298 = vrcp.pop %v282
    %v299 = vmul.f32 %v282, %v298
    %v300 = vsub.f32 1.0, %v299
    %v301 = vmul.f32 %v298, %v300
    %v302 = vadd.f32 %v298, %v301
    %vm303 = vweird.f32 %v282
    %vm304 = vweird.f32 %v298
    %vm305 = vmor %vm303, %vm304
    %v306 = vsel %vm305, %v298, %v302
    %v307 = vand.u32 2147483647, %v282
    %vm308 = vcmp.eq.f32.partialorder %v307, 8.507059e+37
    %v309 = vand.u32 %v282, 2147483648
    %v310 = vor.u32 1.1754944e-38, %v309
    %v311 = vsel %vm308, %v310, %v306
    %v312 = vmul.f32 %v276, %v311
    %313 = vrot.lane.b32.xlu0 %v221, 64
    %v314 = vpop.permute.xlu0 %313
    %315 = vrot.lane.b32.xlu0 %v224, 64
    %v316 = vpop.permute.xlu0 %315
    %v320 = vsel %vm264, %v297, 0
    %v323 = vsel %vm264, %v312, 0
    %325 = vmatpush.msra.mxu0 0.0
    %326 = vmatpush.msra.mxu0 0.0
    %327 = vmatpush.msra.mxu0 0.0
    %328 = vmatpush.msra.mxu0 0.0
    %329 = vmatpush.msra.mxu0 0.0
    %330 = vmatpush.msra.mxu0 0.0
    %331 = vmatpush.msra.mxu0 0.0
    %332 = vmatpush.msra.mxu0 0.0
    %333 = vmatpush.msra.mxu0 0.0
    %334 = vmatpush.msra.mxu0 0.0
    %335 = vmatpush.msra.mxu0 0.0
    %336 = vmatpush.msra.mxu0 0.0
    %337 = vmatpush.msra.mxu0 0.0
    %338 = vmatpush.msra.mxu0 0.0
    %339 = vmatpush.msra.mxu0 %v316
    %340 = vmatpush.msra.mxu0 %v314
    %341 = vmatmul.f32.gmra.mxu0 %v320
    %v342 = vpop.f32.mrf.mxu0
    %v343 = vadd.f32 0.0, %v342
    %344 = vmatmul.f32.gmra.mxu0 %v323
    %v345 = vpop.f32.mrf.mxu0
    %v346 = vadd.f32 0.0, %v345
    %347 = vdwg.mxu0
    %348 = vrot.lane.b32.xlu0 %v221, 120
    %v349 = vpop.permute.xlu0 %348
    %350 = vrot.lane.b32.xlu0 %v224, 120
    %v351 = vpop.permute.xlu0 %350
    %352 = vrot.lane.b32.xlu0 %v221, 88
    %v353 = vpop.permute.xlu0 %352
    %354 = vrot.lane.b32.xlu0 %v224, 88
    %v355 = vpop.permute.xlu0 %354
    %v356 = vsel %vm232, %v349, 0
    %v358 = vsel %vm232, %v351, 0
    %v360 = vsel %vm232, %v353, 0
    %v362 = vsel %vm232, %v355, 0
    %364 = vmatpush.xpose.msra.mxu0 0.0
    %365 = vmatpush.xpose.msra.mxu0 0.0
    %366 = vmatpush.xpose.msra.mxu0 0.0
    %367 = vmatpush.xpose.msra.mxu0 0.0
    %368 = vmatpush.xpose.msra.mxu0 0.0
    %369 = vmatpush.xpose.msra.mxu0 0.0
    %370 = vmatpush.xpose.msra.mxu0 0.0
    %371 = vmatpush.xpose.msra.mxu0 0.0
    %372 = vmatpush.xpose.msra.mxu0 0.0
    %373 = vmatpush.xpose.msra.mxu0 0.0
    %374 = vmatpush.xpose.msra.mxu0 0.0
    %375 = vmatpush.xpose.msra.mxu0 0.0
    %376 = vmatpush.xpose.msra.mxu0 0.0
    %377 = vmatpush.xpose.msra.mxu0 0.0
    %378 = vmatpush.xpose.msra.mxu0 %v362
    %379 = vmatpush.xpose.msra.mxu0 %v360
    %380 = vmatmul.f32.gmra.mxu0 %v356
    %v381 = vpop.f32.mrf.mxu0
    %v382 = vadd.f32 %v186, %v381
    %383 = vmatmul.f32.gmra.mxu0 %v358
    %v384 = vpop.f32.mrf.mxu0
    %v385 = vadd.f32 %v187, %v384
    %386 = vdwg.mxu0
    %v387 = vsel %vm264, %v382, -inf
    %388 = vmax.xlane.f32.xlu0 %v387
    %v389 = vpop.xlane.xlu0 %388
    %v390 = vsel %vm264, %v385, -inf
    %391 = vmax.xlane.f32.xlu0 %v390
    %v392 = vpop.xlane.xlu0 %391
    %v393 = vsub.f32 %v382, %v389
    %v394 = vsub.f32 %v385, %v392
    %v395 = vmul.f32 %v393, 1.442695
    %v396 = vpow.pop %v395
    %v397 = vmul.f32 %v394, 1.442695
    %v398 = vpow.pop %v397
    %v399 = vsel %vm264, %v396, 0.0
    %400 = vadd.xlane.f32.xlu0 %v399
    %v401 = vpop.xlane.xlu0 %400
    %v402 = vsel %vm264, %v398, 0.0
    %403 = vadd.xlane.f32.xlu0 %v402
    %v404 = vpop.xlane.xlu0 %403
    %v405 = vrcp.pop %v401
    %v406 = vmul.f32 %v401, %v405
    %v407 = vsub.f32 1.0, %v406
    %v408 = vmul.f32 %v405, %v407
    %v409 = vadd.f32 %v405, %v408
    %vm410 = vweird.f32 %v401
    %vm411 = vweird.f32 %v405
    %vm412 = vmor %vm410, %vm411
    %v413 = vsel %vm412, %v405, %v409
    %v414 = vand.u32 2147483647, %v401
    %vm415 = vcmp.eq.f32.partialorder %v414, 8.507059e+37
    %v416 = vand.u32 %v401, 2147483648
    %v417 = vor.u32 1.1754944e-38, %v416
    %v418 = vsel %vm415, %v417, %v413
    %v419 = vmul.f32 %v396, %v418
    %v420 = vrcp.pop %v404
    %v421 = vmul.f32 %v404, %v420
    %v422 = vsub.f32 1.0, %v421
    %v423 = vmul.f32 %v420, %v422
    %v424 = vadd.f32 %v420, %v423
    %vm425 = vweird.f32 %v404
    %vm426 = vweird.f32 %v420
    %vm427 = vmor %vm425, %vm426
    %v428 = vsel %vm427, %v420, %v424
    %v429 = vand.u32 2147483647, %v404
    %vm430 = vcmp.eq.f32.partialorder %v429, 8.507059e+37
    %v431 = vand.u32 %v404, 2147483648
    %v432 = vor.u32 1.1754944e-38, %v431
    %v433 = vsel %vm430, %v432, %v428
    %v434 = vmul.f32 %v398, %v433
    %435 = vrot.lane.b32.xlu0 %v221, 56
    %v436 = vpop.permute.xlu0 %435
    %437 = vrot.lane.b32.xlu0 %v224, 56
    %v438 = vpop.permute.xlu0 %437
    %v442 = vsel %vm264, %v419, 0
    %v445 = vsel %vm264, %v434, 0
    %447 = vmatpush.msra.mxu0 0.0
    %448 = vmatpush.msra.mxu0 0.0
    %449 = vmatpush.msra.mxu0 0.0
    %450 = vmatpush.msra.mxu0 0.0
    %451 = vmatpush.msra.mxu0 0.0
    %452 = vmatpush.msra.mxu0 0.0
    %453 = vmatpush.msra.mxu0 0.0
    %454 = vmatpush.msra.mxu0 0.0
    %455 = vmatpush.msra.mxu0 0.0
    %456 = vmatpush.msra.mxu0 0.0
    %457 = vmatpush.msra.mxu0 0.0
    %458 = vmatpush.msra.mxu0 0.0
    %459 = vmatpush.msra.mxu0 0.0
    %460 = vmatpush.msra.mxu0 0.0
    %461 = vmatpush.msra.mxu0 %v438
    %462 = vmatpush.msra.mxu0 %v436
    %463 = vmatmul.f32.gmra.mxu0 %v442
    %v464 = vpop.f32.mrf.mxu0
    %v465 = vadd.f32 0.0, %v464
    %466 = vmatmul.f32.gmra.mxu0 %v445
    %v467 = vpop.f32.mrf.mxu0
    %v468 = vadd.f32 0.0, %v467
    %469 = vdwg.mxu0
    %470 = vrot.lane.b32.xlu0 %v221, 112
    %v471 = vpop.permute.xlu0 %470
    %472 = vrot.lane.b32.xlu0 %v224, 112
    %v473 = vpop.permute.xlu0 %472
    %474 = vrot.lane.b32.xlu0 %v221, 80
    %v475 = vpop.permute.xlu0 %474
    %476 = vrot.lane.b32.xlu0 %v224, 80
    %v477 = vpop.permute.xlu0 %476
    %v478 = vsel %vm232, %v471, 0
    %v480 = vsel %vm232, %v473, 0
    %v482 = vsel %vm232, %v475, 0
    %v484 = vsel %vm232, %v477, 0
    %486 = vmatpush.xpose.msra.mxu0 0.0
    %487 = vmatpush.xpose.msra.mxu0 0.0
    %488 = vmatpush.xpose.msra.mxu0 0.0
    %489 = vmatpush.xpose.msra.mxu0 0.0
    %490 = vmatpush.xpose.msra.mxu0 0.0
    %491 = vmatpush.xpose.msra.mxu0 0.0
    %492 = vmatpush.xpose.msra.mxu0 0.0
    %493 = vmatpush.xpose.msra.mxu0 0.0
    %494 = vmatpush.xpose.msra.mxu0 0.0
    %495 = vmatpush.xpose.msra.mxu0 0.0
    %496 = vmatpush.xpose.msra.mxu0 0.0
    %497 = vmatpush.xpose.msra.mxu0 0.0
    %498 = vmatpush.xpose.msra.mxu0 0.0
    %499 = vmatpush.xpose.msra.mxu0 0.0
    %500 = vmatpush.xpose.msra.mxu0 %v484
    %501 = vmatpush.xpose.msra.mxu0 %v482
    %502 = vmatmul.f32.gmra.mxu0 %v478
    %v503 = vpop.f32.mrf.mxu0
    %v504 = vadd.f32 %v186, %v503
    %505 = vmatmul.f32.gmra.mxu0 %v480
    %v506 = vpop.f32.mrf.mxu0
    %v507 = vadd.f32 %v187, %v506
    %508 = vdwg.mxu0
    %v509 = vsel %vm264, %v504, -inf
    %510 = vmax.xlane.f32.xlu0 %v509
    %v511 = vpop.xlane.xlu0 %510
    %v512 = vsel %vm264, %v507, -inf
    %513 = vmax.xlane.f32.xlu0 %v512
    %v514 = vpop.xlane.xlu0 %513
    %v515 = vsub.f32 %v504, %v511
    %v516 = vsub.f32 %v507, %v514
    %v517 = vmul.f32 %v515, 1.442695
    %v518 = vpow.pop %v517
    %v519 = vmul.f32 %v516, 1.442695
    %v520 = vpow.pop %v519
    %v521 = vsel %vm264, %v518, 0.0
    %522 = vadd.xlane.f32.xlu0 %v521
    %v523 = vpop.xlane.xlu0 %522
    %v524 = vsel %vm264, %v520, 0.0
    %525 = vadd.xlane.f32.xlu0 %v524
    %v526 = vpop.xlane.xlu0 %525
    %v527 = vrcp.pop %v523
    %v528 = vmul.f32 %v523, %v527
    %v529 = vsub.f32 1.0, %v528
    %v530 = vmul.f32 %v527, %v529
    %v531 = vadd.f32 %v527, %v530
    %vm532 = vweird.f32 %v523
    %vm533 = vweird.f32 %v527
    %vm534 = vmor %vm532, %vm533
    %v535 = vsel %vm534, %v527, %v531
    %v536 = vand.u32 2147483647, %v523
    %vm537 = vcmp.eq.f32.partialorder %v536, 8.507059e+37
    %v538 = vand.u32 %v523, 2147483648
    %v539 = vor.u32 1.1754944e-38, %v538
    %v540 = vsel %vm537, %v539, %v535
    %v541 = vmul.f32 %v518, %v540
    %v542 = vrcp.pop %v526
    %v543 = vmul.f32 %v526, %v542
    %v544 = vsub.f32 1.0, %v543
    %v545 = vmul.f32 %v542, %v544
    %v546 = vadd.f32 %v542, %v545
    %vm547 = vweird.f32 %v526
    %vm548 = vweird.f32 %v542
    %vm549 = vmor %vm547, %vm548
    %v550 = vsel %vm549, %v542, %v546
    %v551 = vand.u32 2147483647, %v526
    %vm552 = vcmp.eq.f32.partialorder %v551, 8.507059e+37
    %v553 = vand.u32 %v526, 2147483648
    %v554 = vor.u32 1.1754944e-38, %v553
    %v555 = vsel %vm552, %v554, %v550
    %v556 = vmul.f32 %v520, %v555
    %557 = vrot.lane.b32.xlu0 %v221, 48
    %v558 = vpop.permute.xlu0 %557
    %559 = vrot.lane.b32.xlu0 %v224, 48
    %v560 = vpop.permute.xlu0 %559
    %v564 = vsel %vm264, %v541, 0
    %v567 = vsel %vm264, %v556, 0
    %569 = vmatpush.msra.mxu0 0.0
    %570 = vmatpush.msra.mxu0 0.0
    %571 = vmatpush.msra.mxu0 0.0
    %572 = vmatpush.msra.mxu0 0.0
    %573 = vmatpush.msra.mxu0 0.0
    %574 = vmatpush.msra.mxu0 0.0
    %575 = vmatpush.msra.mxu0 0.0
    %576 = vmatpush.msra.mxu0 0.0
    %577 = vmatpush.msra.mxu0 0.0
    %578 = vmatpush.msra.mxu0 0.0
    %579 = vmatpush.msra.mxu0 0.0
    %580 = vmatpush.msra.mxu0 0.0
    %581 = vmatpush.msra.mxu0 0.0
    %582 = vmatpush.msra.mxu0 0.0
    %583 = vmatpush.msra.mxu0 %v560
    %584 = vmatpush.msra.mxu0 %v558
    %585 = vmatmul.f32.gmra.mxu0 %v564
    %v586 = vpop.f32.mrf.mxu0
    %v587 = vadd.f32 0.0, %v586
    %588 = vmatmul.f32.gmra.mxu0 %v567
    %v589 = vpop.f32.mrf.mxu0
    %v590 = vadd.f32 0.0, %v589
    %591 = vdwg.mxu0
    %592 = vrot.lane.b32.xlu0 %v221, 104
    %v593 = vpop.permute.xlu0 %592
    %594 = vrot.lane.b32.xlu0 %v224, 104
    %v595 = vpop.permute.xlu0 %594
    %596 = vrot.lane.b32.xlu0 %v221, 72
    %v597 = vpop.permute.xlu0 %596
    %598 = vrot.lane.b32.xlu0 %v224, 72
    %v599 = vpop.permute.xlu0 %598
    %v600 = vsel %vm232, %v593, 0
    %v602 = vsel %vm232, %v595, 0
    %v604 = vsel %vm232, %v597, 0
    %v606 = vsel %vm232, %v599, 0
    %608 = vmatpush.xpose.msra.mxu0 0.0
    %609 = vmatpush.xpose.msra.mxu0 0.0
    %610 = vmatpush.xpose.msra.mxu0 0.0
    %611 = vmatpush.xpose.msra.mxu0 0.0
    %612 = vmatpush.xpose.msra.mxu0 0.0
    %613 = vmatpush.xpose.msra.mxu0 0.0
    %614 = vmatpush.xpose.msra.mxu0 0.0
    %615 = vmatpush.xpose.msra.mxu0 0.0
    %616 = vmatpush.xpose.msra.mxu0 0.0
    %617 = vmatpush.xpose.msra.mxu0 0.0
    %618 = vmatpush.xpose.msra.mxu0 0.0
    %619 = vmatpush.xpose.msra.mxu0 0.0
    %620 = vmatpush.xpose.msra.mxu0 0.0
    %621 = vmatpush.xpose.msra.mxu0 0.0
    %622 = vmatpush.xpose.msra.mxu0 %v606
    %623 = vmatpush.xpose.msra.mxu0 %v604
    %624 = vmatmul.f32.gmra.mxu0 %v600
    %v625 = vpop.f32.mrf.mxu0
    %v626 = vadd.f32 %v186, %v625
    %627 = vmatmul.f32.gmra.mxu0 %v602
    %v628 = vpop.f32.mrf.mxu0
    %v629 = vadd.f32 %v187, %v628
    %630 = vdwg.mxu0
    %v631 = vsel %vm264, %v626, -inf
    %632 = vmax.xlane.f32.xlu0 %v631
    %v633 = vpop.xlane.xlu0 %632
    %v634 = vsel %vm264, %v629, -inf
    %635 = vmax.xlane.f32.xlu0 %v634
    %v636 = vpop.xlane.xlu0 %635
    %v637 = vsub.f32 %v626, %v633
    %v638 = vsub.f32 %v629, %v636
    %v639 = vmul.f32 %v637, 1.442695
    %v640 = vpow.pop %v639
    %v641 = vmul.f32 %v638, 1.442695
    %v642 = vpow.pop %v641
    %v643 = vsel %vm264, %v640, 0.0
    %644 = vadd.xlane.f32.xlu0 %v643
    %v645 = vpop.xlane.xlu0 %644
    %v646 = vsel %vm264, %v642, 0.0
    %647 = vadd.xlane.f32.xlu0 %v646
    %v648 = vpop.xlane.xlu0 %647
    %v649 = vrcp.pop %v645
    %v650 = vmul.f32 %v645, %v649
    %v651 = vsub.f32 1.0, %v650
    %v652 = vmul.f32 %v649, %v651
    %v653 = vadd.f32 %v649, %v652
    %vm654 = vweird.f32 %v645
    %vm655 = vweird.f32 %v649
    %vm656 = vmor %vm654, %vm655
    %v657 = vsel %vm656, %v649, %v653
    %v658 = vand.u32 2147483647, %v645
    %vm659 = vcmp.eq.f32.partialorder %v658, 8.507059e+37
    %v660 = vand.u32 %v645, 2147483648
    %v661 = vor.u32 1.1754944e-38, %v660
    %v662 = vsel %vm659, %v661, %v657
    %v663 = vmul.f32 %v640, %v662
    %v664 = vrcp.pop %v648
    %v665 = vmul.f32 %v648, %v664
    %v666 = vsub.f32 1.0, %v665
    %v667 = vmul.f32 %v664, %v666
    %v668 = vadd.f32 %v664, %v667
    %vm669 = vweird.f32 %v648
    %vm670 = vweird.f32 %v664
    %vm671 = vmor %vm669, %vm670
    %v672 = vsel %vm671, %v664, %v668
    %v673 = vand.u32 2147483647, %v648
    %vm674 = vcmp.eq.f32.partialorder %v673, 8.507059e+37
    %v675 = vand.u32 %v648, 2147483648
    %v676 = vor.u32 1.1754944e-38, %v675
    %v677 = vsel %vm674, %v676, %v672
    %v678 = vmul.f32 %v642, %v677
    %679 = vrot.lane.b32.xlu0 %v221, 40
    %v680 = vpop.permute.xlu0 %679
    %681 = vrot.lane.b32.xlu0 %v224, 40
    %v682 = vpop.permute.xlu0 %681
    %v686 = vsel %vm264, %v663, 0
    %v689 = vsel %vm264, %v678, 0
    %691 = vmatpush.msra.mxu0 0.0
    %692 = vmatpush.msra.mxu0 0.0
    %693 = vmatpush.msra.mxu0 0.0
    %694 = vmatpush.msra.mxu0 0.0
    %695 = vmatpush.msra.mxu0 0.0
    %696 = vmatpush.msra.mxu0 0.0
    %697 = vmatpush.msra.mxu0 0.0
    %698 = vmatpush.msra.mxu0 0.0
    %699 = vmatpush.msra.mxu0 0.0
    %700 = vmatpush.msra.mxu0 0.0
    %701 = vmatpush.msra.mxu0 0.0
    %702 = vmatpush.msra.mxu0 0.0
    %703 = vmatpush.msra.mxu0 0.0
    %704 = vmatpush.msra.mxu0 0.0
    %705 = vmatpush.msra.mxu0 %v682
    %706 = vmatpush.msra.mxu0 %v680
    %707 = vmatmul.f32.gmra.mxu0 %v686
    %v708 = vpop.f32.mrf.mxu0
    %v709 = vadd.f32 0.0, %v708
    %710 = vmatmul.f32.gmra.mxu0 %v689
    %v711 = vpop.f32.mrf.mxu0
    %v712 = vadd.f32 0.0, %v711
    %713 = vdwg.mxu0
    %716 = vrot.lane.b32.xlu0 %v465, 8
    %v717 = vpop.permute.xlu0 %716
    %718 = vrot.lane.b32.xlu0 %v468, 8
    %v719 = vpop.permute.xlu0 %718
    %724 = vrot.lane.b32.xlu0 %v587, 16
    %v725 = vpop.permute.xlu0 %724
    %726 = vrot.lane.b32.xlu0 %v590, 16
    %v727 = vpop.permute.xlu0 %726
    %732 = vrot.lane.b32.xlu0 %v709, 24
    %v733 = vpop.permute.xlu0 %732
    %734 = vrot.lane.b32.xlu0 %v712, 24
    %v735 = vpop.permute.xlu0 %734
    %v738 = vsel %vm232, %v343, %v717
    %v739 = vsel %vm232, %v346, %v719
    %v740 = vsel %vm264, %v738, %v725
    %v741 = vsel %vm264, %v739, %v727
    %vm742 = vcmask 195584
    %v743 = vsel %vm742, %v740, %v733
    %v744 = vsel %vm742, %v741, %v735
    %v745 = vld [vmem:[%s7] sm:$0xff]
    %v746 = vld [vmem:[%s7 + $0x8] sm:$0xff]
    %v747 = vld [vmem:[%s7 + $0x10] sm:$0xff]
    %v748 = vld [vmem:[%s7 + $0x18] sm:$0xff]
    %v749 = vperm.slane %v188, 0
    %v751 = vsel %vm107, %v743, 0
    %v754 = vsel %vm107, %v744, 0
    %756 = vmatpush.msra.mxu0 0.0
    %757 = vmatpush.msra.mxu0 0.0
    %758 = vmatpush.msra.mxu0 0.0
    %759 = vmatpush.msra.mxu0 0.0
    %760 = vmatpush.msra.mxu0 0.0
    %761 = vmatpush.msra.mxu0 0.0
    %762 = vmatpush.msra.mxu0 0.0
    %763 = vmatpush.msra.mxu0 0.0
    %764 = vmatpush.msra.mxu0 0.0
    %765 = vmatpush.msra.mxu0 0.0
    %766 = vmatpush.msra.mxu0 0.0
    %767 = vmatpush.msra.mxu0 0.0
    %768 = vmatpush.msra.mxu0 %v748
    %769 = vmatpush.msra.mxu0 %v747
    %770 = vmatpush.msra.mxu0 %v746
    %771 = vmatpush.msra.mxu0 %v745
    %772 = vmatmul.f32.gmra.mxu0 %v751
    %v773 = vpop.f32.mrf.mxu0
    %v774 = vadd.f32 %v749, %v773
    %775 = vmatmul.f32.gmra.mxu0 %v754
    %v776 = vpop.f32.mrf.mxu0
    %v777 = vadd.f32 %v749, %v776
    %778 = vdwg.mxu0
    %v779 = vadd.f32 %v774, %v163
    %v780 = vadd.f32 %v777, %v164
    %v781 = vsel %vm107, %v779, 0.0
    %782 = vadd.xlane.f32.xlu0 %v781
    %v783 = vpop.xlane.xlu0 %782
    %v784 = vsel %vm107, %v780, 0.0
    %785 = vadd.xlane.f32.xlu0 %v784
    %v786 = vpop.xlane.xlu0 %785
    %v787 = vmul.f32 %v783, %v120
    %v788 = vmul.f32 %v786, %v120
    %v789 = vsub.f32 %v779, %v787
    %v790 = vsub.f32 %v780, %v788
    %v791 = vmul.f32 %v789, %v789
    %v792 = vmul.f32 %v790, %v790
    %v793 = vsel %vm107, %v791, 0.0
    %794 = vadd.xlane.f32.xlu0 %v793
    %v795 = vpop.xlane.xlu0 %794
    %v796 = vsel %vm107, %v792, 0.0
    %797 = vadd.xlane.f32.xlu0 %v796
    %v798 = vpop.xlane.xlu0 %797
    %v799 = vmul.f32 %v795, %v120
    %v800 = vmul.f32 %v798, %v120
    %v801 = vadd.f32 %v799, 1e-12
    %v802 = vadd.f32 %v800, 1e-12
    %v803 = vrsqrt.pop %v801
    %v804 = vmul.f32 %v803, %v801
    %v805 = vmul.f32 %v804, %v803
    %v806 = vmul.f32 0.5, %v805
    %v807 = vsub.f32 1.5, %v806
    %v808 = vmul.f32 %v803, %v807
    %vm809 = vweird.f32 %v801
    %vm810 = vweird.f32 %v803
    %vm811 = vmor %vm809, %vm810
    %v812 = vsel %vm811, %v803, %v808
    %v813 = vrsqrt.pop %v802
    %v814 = vmul.f32 %v813, %v802
    %v815 = vmul.f32 %v814, %v813
    %v816 = vmul.f32 0.5, %v815
    %v817 = vsub.f32 1.5, %v816
    %v818 = vmul.f32 %v813, %v817
    %vm819 = vweird.f32 %v802
    %vm820 = vweird.f32 %v813
    %vm821 = vmor %vm819, %vm820
    %v822 = vsel %vm821, %v813, %v818
    %v823 = vmul.f32 %v789, %v812
    %v824 = vmul.f32 %v790, %v822
    %v825 = vperm.slane %v188, 1
    %v826 = vmul.f32 %v823, %v825
    %v827 = vmul.f32 %v824, %v825
    %v828 = vperm.slane %v188, 2
    %v829 = vadd.f32 %v826, %v828
    %v830 = vadd.f32 %v827, %v828
    %v831 = vld [vmem:[%s8] sm:$0xff]
    %v832 = vld [vmem:[%s8 + $0x8] sm:$0xff]
    %v833 = vld [vmem:[%s8 + $0x10] sm:$0xff]
    %v834 = vld [vmem:[%s8 + $0x18] sm:$0xff]
    %v835 = vld [vmem:[%s9] sm:$0x1]
    %v837 = vperm.slane %v835, 0
    %v840 = vsel %vm107, %v829, 0
    %v843 = vsel %vm107, %v830, 0
    %845 = vmatpush.msra.mxu0 0.0
    %846 = vmatpush.msra.mxu0 0.0
    %847 = vmatpush.msra.mxu0 0.0
    %848 = vmatpush.msra.mxu0 0.0
    %849 = vmatpush.msra.mxu0 0.0
    %850 = vmatpush.msra.mxu0 0.0
    %851 = vmatpush.msra.mxu0 0.0
    %852 = vmatpush.msra.mxu0 0.0
    %853 = vmatpush.msra.mxu0 0.0
    %854 = vmatpush.msra.mxu0 0.0
    %855 = vmatpush.msra.mxu0 0.0
    %856 = vmatpush.msra.mxu0 0.0
    %857 = vmatpush.msra.mxu0 %v834
    %858 = vmatpush.msra.mxu0 %v833
    %859 = vmatpush.msra.mxu0 %v832
    %860 = vmatpush.msra.mxu0 %v831
    %861 = vmatmul.f32.gmra.mxu0 %v840
    %v862 = vpop.f32.mrf.mxu0
    %v863 = vadd.f32 %v837, %v862
    %864 = vmatmul.f32.gmra.mxu0 %v843
    %v865 = vpop.f32.mrf.mxu0
    %v866 = vadd.f32 %v837, %v865
    %867 = vdwg.mxu0
    %v868 = vmul.f32 %v863, 0.5
    %v869 = vmul.f32 %v866, 0.5
    %v870 = vrcp.pop 1.4142135
    %v871 = vmul.f32 1.4142135, %v870
    %v872 = vsub.f32 1.0, %v871
    %v873 = vmul.f32 %v870, %v872
    %v874 = vadd.f32 %v870, %v873
    %vm875 = vweird.f32 %v870
    %v876 = vsel %vm875, %v870, %v874
    %v877 = vmul.f32 %v863, %v876
    %v878 = vmul.f32 %v866, %v876
    %v879 = vmul.f32 %v877, %v877
    %v880 = vmin.f32 16.0, %v879
    %v881 = vmul.f32 %v880, 2.1237322e-06
    %v882 = vadd.f32 %v881, 0.00028619796
    %v883 = vmul.f32 %v880, %v882
    %v884 = vadd.f32 %v883, 0.0036580483
    %v885 = vmul.f32 %v880, %v884
    %v886 = vadd.f32 %v885, 0.05243302
    %v887 = vmul.f32 %v880, %v886
    %v888 = vadd.f32 %v887, 0.18741608
    %v889 = vmul.f32 %v880, %v888
    %v890 = vadd.f32 %v889, 1.1283791
    %v891 = vmul.f32 %v877, %v890
    %v892 = vmul.f32 %v880, 3.8918573e-05
    %v893 = vadd.f32 %v892, 0.001143296
    %v894 = vmul.f32 %v880, %v893
    %v895 = vadd.f32 %v894, 0.014752088
    %v896 = vmul.f32 %v880, %v895
    %v897 = vadd.f32 %v896, 0.112945676
    %v898 = vmul.f32 %v880, %v897
    %v899 = vadd.f32 %v898, 0.4994258
    %v900 = vmul.f32 %v880, %v899
    %v901 = vadd.f32 %v900, 1.0
    %v902 = vrcp.pop %v901
    %v903 = vmul.f32 %v901, %v902
    %v904 = vsub.f32 1.0, %v903
    %v905 = vmul.f32 %v902, %v904
    %v906 = vadd.f32 %v902, %v905
    %vm907 = vweird.f32 %v901
    %vm908 = vweird.f32 %v902
    %vm909 = vmor %vm907, %vm908
    %v910 = vsel %vm909, %v902, %v906
    %v911 = vand.u32 2147483647, %v901
    %vm912 = vcmp.eq.f32.partialorder %v911, 8.507059e+37
    %v913 = vand.u32 %v901, 2147483648
    %v914 = vor.u32 1.1754944e-38, %v913
    %v915 = vsel %vm912, %v914, %v910
    %v916 = vmul.f32 %v891, %v915
    %v917 = vmin.f32 %v916, 1.0
    %v918 = vmax.f32 %v917, -1.0
    %v919 = vmul.f32 %v878, %v878
    %v920 = vmin.f32 16.0, %v919
    %v921 = vmul.f32 %v920, 2.1237322e-06
    %v922 = vadd.f32 %v921, 0.00028619796
    %v923 = vmul.f32 %v920, %v922
    %v924 = vadd.f32 %v923, 0.0036580483
    %v925 = vmul.f32 %v920, %v924
    %v926 = vadd.f32 %v925, 0.05243302
    %v927 = vmul.f32 %v920, %v926
    %v928 = vadd.f32 %v927, 0.18741608
    %v929 = vmul.f32 %v920, %v928
    %v930 = vadd.f32 %v929, 1.1283791
    %v931 = vmul.f32 %v878, %v930
    %v932 = vmul.f32 %v920, 3.8918573e-05
    %v933 = vadd.f32 %v932, 0.001143296
    %v934 = vmul.f32 %v920, %v933
    %v935 = vadd.f32 %v934, 0.014752088
    %v936 = vmul.f32 %v920, %v935
    %v937 = vadd.f32 %v936, 0.112945676
    %v938 = vmul.f32 %v920, %v937
    %v939 = vadd.f32 %v938, 0.4994258
    %v940 = vmul.f32 %v920, %v939
    %v941 = vadd.f32 %v940, 1.0
    %v942 = vrcp.pop %v941
    %v943 = vmul.f32 %v941, %v942
    %v944 = vsub.f32 1.0, %v943
    %v945 = vmul.f32 %v942, %v944
    %v946 = vadd.f32 %v942, %v945
    %vm947 = vweird.f32 %v941
    %vm948 = vweird.f32 %v942
    %vm949 = vmor %vm947, %vm948
    %v950 = vsel %vm949, %v942, %v946
    %v951 = vand.u32 2147483647, %v941
    %vm952 = vcmp.eq.f32.partialorder %v951, 8.507059e+37
    %v953 = vand.u32 %v941, 2147483648
    %v954 = vor.u32 1.1754944e-38, %v953
    %v955 = vsel %vm952, %v954, %v950
    %v956 = vmul.f32 %v931, %v955
    %v957 = vmin.f32 %v956, 1.0
    %v958 = vmax.f32 %v957, -1.0
    %v959 = vadd.f32 %v918, 1.0
    %v960 = vadd.f32 %v958, 1.0
    %v961 = vmul.f32 %v868, %v959
    %v962 = vmul.f32 %v869, %v960
    %v963 = vld [vmem:[%s10] sm:$0xff]
    %v964 = vld [vmem:[%s10 + $0x8] sm:$0xff]
    %v965 = vld [vmem:[%s10 + $0x10] sm:$0xff]
    %v966 = vld [vmem:[%s10 + $0x18] sm:$0xff]
    %v967 = vld [vmem:[%s10 + $0x20] sm:$0xff]
    %v968 = vld [vmem:[%s10 + $0x28] sm:$0xff]
    %v969 = vld [vmem:[%s10 + $0x30] sm:$0xff]
    %v970 = vld [vmem:[%s10 + $0x38] sm:$0xff]
    %v971 = vperm.slane %v188, 3
    %vm972 = vcmask 523264
    %v974 = vsel %vm972, %v961, 0
    %v977 = vsel %vm972, %v962, 0
    %979 = vmatpush.msra.mxu0 0.0
    %980 = vmatpush.msra.mxu0 0.0
    %981 = vmatpush.msra.mxu0 0.0
    %982 = vmatpush.msra.mxu0 0.0
    %983 = vmatpush.msra.mxu0 0.0
    %984 = vmatpush.msra.mxu0 0.0
    %985 = vmatpush.msra.mxu0 0.0
    %986 = vmatpush.msra.mxu0 0.0
    %987 = vmatpush.msra.mxu0 %v970
    %988 = vmatpush.msra.mxu0 %v969
    %989 = vmatpush.msra.mxu0 %v968
    %990 = vmatpush.msra.mxu0 %v967
    %991 = vmatpush.msra.mxu0 %v966
    %992 = vmatpush.msra.mxu0 %v965
    %993 = vmatpush.msra.mxu0 %v964
    %994 = vmatpush.msra.mxu0 %v963
    %995 = vmatmul.f32.gmra.mxu0 %v974
    %v996 = vpop.f32.mrf.mxu0
    %v997 = vadd.f32 %v971, %v996
    %998 = vmatmul.f32.gmra.mxu0 %v977
    %v999 = vpop.f32.mrf.mxu0
    %v1000 = vadd.f32 %v971, %v999
    %1001 = vdwg.mxu0
    %v1002 = vadd.f32 %v997, %v829
    %v1003 = vadd.f32 %v1000, %v830
    %v1004 = vsel %vm107, %v1002, 0.0
    %1005 = vadd.xlane.f32.xlu0 %v1004
    %v1006 = vpop.xlane.xlu0 %1005
    %v1007 = vsel %vm107, %v1003, 0.0
    %1008 = vadd.xlane.f32.xlu0 %v1007
    %v1009 = vpop.xlane.xlu0 %1008
    %v1010 = vmul.f32 %v1006, %v120
    %v1011 = vmul.f32 %v1009, %v120
    %v1012 = vsub.f32 %v1002, %v1010
    %v1013 = vsub.f32 %v1003, %v1011
    %v1014 = vmul.f32 %v1012, %v1012
    %v1015 = vmul.f32 %v1013, %v1013
    %v1016 = vsel %vm107, %v1014, 0.0
    %1017 = vadd.xlane.f32.xlu0 %v1016
    %v1018 = vpop.xlane.xlu0 %1017
    %v1019 = vsel %vm107, %v1015, 0.0
    %1020 = vadd.xlane.f32.xlu0 %v1019
    %v1021 = vpop.xlane.xlu0 %1020
    %v1022 = vmul.f32 %v1018, %v120
    %v1023 = vmul.f32 %v1021, %v120
    %v1024 = vadd.f32 %v1022, 1e-12
    %v1025 = vadd.f32 %v1023, 1e-12
    %v1026 = vrsqrt.pop %v1024
    %v1027 = vmul.f32 %v1026, %v1024
    %v1028 = vmul.f32 %v1027, %v1026
    %v1029 = vmul.f32 0.5, %v1028
    %v1030 = vsub.f32 1.5, %v1029
    %v1031 = vmul.f32 %v1026, %v1030
    %vm1032 = vweird.f32 %v1024
    %vm1033 = vweird.f32 %v1026
    %vm1034 = vmor %vm1032, %vm1033
    %v1035 = vsel %vm1034, %v1026, %v1031
    %v1036 = vrsqrt.pop %v1025
    %v1037 = vmul.f32 %v1036, %v1025
    %v1038 = vmul.f32 %v1037, %v1036
    %v1039 = vmul.f32 0.5, %v1038
    %v1040 = vsub.f32 1.5, %v1039
    %v1041 = vmul.f32 %v1036, %v1040
    %vm1042 = vweird.f32 %v1025
    %vm1043 = vweird.f32 %v1036
    %vm1044 = vmor %vm1042, %vm1043
    %v1045 = vsel %vm1044, %v1036, %v1041
    %v1046 = vmul.f32 %v1012, %v1035
    %v1047 = vmul.f32 %v1013, %v1045
    %v1048 = vperm.slane %v188, 4
    %v1049 = vmul.f32 %v1046, %v1048
    %v1050 = vmul.f32 %v1047, %v1048
    %v1051 = vperm.slane %v188, 5
    %v1052 = vadd.f32 %v1049, %v1051
    %v1053 = vadd.f32 %v1050, %v1051
    %s1054 = scalar_lea.vmem %s11, 8
    %v1055 = vld [vmem:[%s1054] sm:$0x3f]
    %s1056 = scalar_lea.vmem %s5, 32
    %v1057 = vld [vmem:[%s1056] sm:$0xff]
    %v1058 = vld [vmem:[%s1056 + $0x8] sm:$0xff]
    %v1059 = vld [vmem:[%s1056 + $0x10] sm:$0xff]
    %v1060 = vld [vmem:[%s1056 + $0x18] sm:$0xff]
    %s1061 = scalar_lea.vmem %s6, 1
    %v1062 = vld [vmem:[%s1061] sm:$0x1]
    %v1064 = vperm.slane %v1062, 0
    %v1067 = vsel %vm107, %v1052, 0
    %v1070 = vsel %vm107, %v1053, 0
    %1072 = vmatpush.msra.mxu0 0.0
    %1073 = vmatpush.msra.mxu0 0.0
    %1074 = vmatpush.msra.mxu0 0.0
    %1075 = vmatpush.msra.mxu0 0.0
    %1076 = vmatpush.msra.mxu0 0.0
    %1077 = vmatpush.msra.mxu0 0.0
    %1078 = vmatpush.msra.mxu0 0.0
    %1079 = vmatpush.msra.mxu0 0.0
    %1080 = vmatpush.msra.mxu0 0.0
    %1081 = vmatpush.msra.mxu0 0.0
    %1082 = vmatpush.msra.mxu0 0.0
    %1083 = vmatpush.msra.mxu0 0.0
    %1084 = vmatpush.msra.mxu0 %v1060
    %1085 = vmatpush.msra.mxu0 %v1059
    %1086 = vmatpush.msra.mxu0 %v1058
    %1087 = vmatpush.msra.mxu0 %v1057
    %1088 = vmatmul.f32.gmra.mxu0 %v1067
    %v1089 = vpop.f32.mrf.mxu0
    %v1090 = vadd.f32 %v1064, %v1089
    %1091 = vmatmul.f32.gmra.mxu0 %v1070
    %v1092 = vpop.f32.mrf.mxu0
    %v1093 = vadd.f32 %v1064, %v1092
    %1094 = vdwg.mxu0
    %1097 = vrot.lane.b32.xlu0 %v1090, 96
    %v1098 = vpop.permute.xlu0 %1097
    %1099 = vrot.lane.b32.xlu0 %v1093, 96
    %v1100 = vpop.permute.xlu0 %1099
    %v1101 = vsel %vm232, %v1090, 0
    %v1103 = vsel %vm232, %v1093, 0
    %v1105 = vsel %vm232, %v1098, 0
    %v1107 = vsel %vm232, %v1100, 0
    %1109 = vmatpush.xpose.msra.mxu0 0.0
    %1110 = vmatpush.xpose.msra.mxu0 0.0
    %1111 = vmatpush.xpose.msra.mxu0 0.0
    %1112 = vmatpush.xpose.msra.mxu0 0.0
    %1113 = vmatpush.xpose.msra.mxu0 0.0
    %1114 = vmatpush.xpose.msra.mxu0 0.0
    %1115 = vmatpush.xpose.msra.mxu0 0.0
    %1116 = vmatpush.xpose.msra.mxu0 0.0
    %1117 = vmatpush.xpose.msra.mxu0 0.0
    %1118 = vmatpush.xpose.msra.mxu0 0.0
    %1119 = vmatpush.xpose.msra.mxu0 0.0
    %1120 = vmatpush.xpose.msra.mxu0 0.0
    %1121 = vmatpush.xpose.msra.mxu0 0.0
    %1122 = vmatpush.xpose.msra.mxu0 0.0
    %1123 = vmatpush.xpose.msra.mxu0 %v1107
    %1124 = vmatpush.xpose.msra.mxu0 %v1105
    %1125 = vmatmul.f32.gmra.mxu0 %v1101
    %v1126 = vpop.f32.mrf.mxu0
    %v1127 = vadd.f32 %v186, %v1126
    %1128 = vmatmul.f32.gmra.mxu0 %v1103
    %v1129 = vpop.f32.mrf.mxu0
    %v1130 = vadd.f32 %v187, %v1129
    %1131 = vdwg.mxu0
    %v1132 = vsel %vm264, %v1127, -inf
    %1133 = vmax.xlane.f32.xlu0 %v1132
    %v1134 = vpop.xlane.xlu0 %1133
    %v1135 = vsel %vm264, %v1130, -inf
    %1136 = vmax.xlane.f32.xlu0 %v1135
    %v1137 = vpop.xlane.xlu0 %1136
    %v1138 = vsub.f32 %v1127, %v1134
    %v1139 = vsub.f32 %v1130, %v1137
    %v1140 = vmul.f32 %v1138, 1.442695
    %v1141 = vpow.pop %v1140
    %v1142 = vmul.f32 %v1139, 1.442695
    %v1143 = vpow.pop %v1142
    %v1144 = vsel %vm264, %v1141, 0.0
    %1145 = vadd.xlane.f32.xlu0 %v1144
    %v1146 = vpop.xlane.xlu0 %1145
    %v1147 = vsel %vm264, %v1143, 0.0
    %1148 = vadd.xlane.f32.xlu0 %v1147
    %v1149 = vpop.xlane.xlu0 %1148
    %v1150 = vrcp.pop %v1146
    %v1151 = vmul.f32 %v1146, %v1150
    %v1152 = vsub.f32 1.0, %v1151
    %v1153 = vmul.f32 %v1150, %v1152
    %v1154 = vadd.f32 %v1150, %v1153
    %vm1155 = vweird.f32 %v1146
    %vm1156 = vweird.f32 %v1150
    %vm1157 = vmor %vm1155, %vm1156
    %v1158 = vsel %vm1157, %v1150, %v1154
    %v1159 = vand.u32 2147483647, %v1146
    %vm1160 = vcmp.eq.f32.partialorder %v1159, 8.507059e+37
    %v1161 = vand.u32 %v1146, 2147483648
    %v1162 = vor.u32 1.1754944e-38, %v1161
    %v1163 = vsel %vm1160, %v1162, %v1158
    %v1164 = vmul.f32 %v1141, %v1163
    %v1165 = vrcp.pop %v1149
    %v1166 = vmul.f32 %v1149, %v1165
    %v1167 = vsub.f32 1.0, %v1166
    %v1168 = vmul.f32 %v1165, %v1167
    %v1169 = vadd.f32 %v1165, %v1168
    %vm1170 = vweird.f32 %v1149
    %vm1171 = vweird.f32 %v1165
    %vm1172 = vmor %vm1170, %vm1171
    %v1173 = vsel %vm1172, %v1165, %v1169
    %v1174 = vand.u32 2147483647, %v1149
    %vm1175 = vcmp.eq.f32.partialorder %v1174, 8.507059e+37
    %v1176 = vand.u32 %v1149, 2147483648
    %v1177 = vor.u32 1.1754944e-38, %v1176
    %v1178 = vsel %vm1175, %v1177, %v1173
    %v1179 = vmul.f32 %v1143, %v1178
    %1180 = vrot.lane.b32.xlu0 %v1090, 64
    %v1181 = vpop.permute.xlu0 %1180
    %1182 = vrot.lane.b32.xlu0 %v1093, 64
    %v1183 = vpop.permute.xlu0 %1182
    %v1187 = vsel %vm264, %v1164, 0
    %v1190 = vsel %vm264, %v1179, 0
    %1192 = vmatpush.msra.mxu0 0.0
    %1193 = vmatpush.msra.mxu0 0.0
    %1194 = vmatpush.msra.mxu0 0.0
    %1195 = vmatpush.msra.mxu0 0.0
    %1196 = vmatpush.msra.mxu0 0.0
    %1197 = vmatpush.msra.mxu0 0.0
    %1198 = vmatpush.msra.mxu0 0.0
    %1199 = vmatpush.msra.mxu0 0.0
    %1200 = vmatpush.msra.mxu0 0.0
    %1201 = vmatpush.msra.mxu0 0.0
    %1202 = vmatpush.msra.mxu0 0.0
    %1203 = vmatpush.msra.mxu0 0.0
    %1204 = vmatpush.msra.mxu0 0.0
    %1205 = vmatpush.msra.mxu0 0.0
    %1206 = vmatpush.msra.mxu0 %v1183
    %1207 = vmatpush.msra.mxu0 %v1181
    %1208 = vmatmul.f32.gmra.mxu0 %v1187
    %v1209 = vpop.f32.mrf.mxu0
    %v1210 = vadd.f32 0.0, %v1209
    %1211 = vmatmul.f32.gmra.mxu0 %v1190
    %v1212 = vpop.f32.mrf.mxu0
    %v1213 = vadd.f32 0.0, %v1212
    %1214 = vdwg.mxu0
    %1215 = vrot.lane.b32.xlu0 %v1090, 120
    %v1216 = vpop.permute.xlu0 %1215
    %1217 = vrot.lane.b32.xlu0 %v1093, 120
    %v1218 = vpop.permute.xlu0 %1217
    %1219 = vrot.lane.b32.xlu0 %v1090, 88
    %v1220 = vpop.permute.xlu0 %1219
    %1221 = vrot.lane.b32.xlu0 %v1093, 88
    %v1222 = vpop.permute.xlu0 %1221
    %v1223 = vsel %vm232, %v1216, 0
    %v1225 = vsel %vm232, %v1218, 0
    %v1227 = vsel %vm232, %v1220, 0
    %v1229 = vsel %vm232, %v1222, 0
    %1231 = vmatpush.xpose.msra.mxu0 0.0
    %1232 = vmatpush.xpose.msra.mxu0 0.0
    %1233 = vmatpush.xpose.msra.mxu0 0.0
    %1234 = vmatpush.xpose.msra.mxu0 0.0
    %1235 = vmatpush.xpose.msra.mxu0 0.0
    %1236 = vmatpush.xpose.msra.mxu0 0.0
    %1237 = vmatpush.xpose.msra.mxu0 0.0
    %1238 = vmatpush.xpose.msra.mxu0 0.0
    %1239 = vmatpush.xpose.msra.mxu0 0.0
    %1240 = vmatpush.xpose.msra.mxu0 0.0
    %1241 = vmatpush.xpose.msra.mxu0 0.0
    %1242 = vmatpush.xpose.msra.mxu0 0.0
    %1243 = vmatpush.xpose.msra.mxu0 0.0
    %1244 = vmatpush.xpose.msra.mxu0 0.0
    %1245 = vmatpush.xpose.msra.mxu0 %v1229
    %1246 = vmatpush.xpose.msra.mxu0 %v1227
    %1247 = vmatmul.f32.gmra.mxu0 %v1223
    %v1248 = vpop.f32.mrf.mxu0
    %v1249 = vadd.f32 %v186, %v1248
    %1250 = vmatmul.f32.gmra.mxu0 %v1225
    %v1251 = vpop.f32.mrf.mxu0
    %v1252 = vadd.f32 %v187, %v1251
    %1253 = vdwg.mxu0
    %v1254 = vsel %vm264, %v1249, -inf
    %1255 = vmax.xlane.f32.xlu0 %v1254
    %v1256 = vpop.xlane.xlu0 %1255
    %v1257 = vsel %vm264, %v1252, -inf
    %1258 = vmax.xlane.f32.xlu0 %v1257
    %v1259 = vpop.xlane.xlu0 %1258
    %v1260 = vsub.f32 %v1249, %v1256
    %v1261 = vsub.f32 %v1252, %v1259
    %v1262 = vmul.f32 %v1260, 1.442695
    %v1263 = vpow.pop %v1262
    %v1264 = vmul.f32 %v1261, 1.442695
    %v1265 = vpow.pop %v1264
    %v1266 = vsel %vm264, %v1263, 0.0
    %1267 = vadd.xlane.f32.xlu0 %v1266
    %v1268 = vpop.xlane.xlu0 %1267
    %v1269 = vsel %vm264, %v1265, 0.0
    %1270 = vadd.xlane.f32.xlu0 %v1269
    %v1271 = vpop.xlane.xlu0 %1270
    %v1272 = vrcp.pop %v1268
    %v1273 = vmul.f32 %v1268, %v1272
    %v1274 = vsub.f32 1.0, %v1273
    %v1275 = vmul.f32 %v1272, %v1274
    %v1276 = vadd.f32 %v1272, %v1275
    %vm1277 = vweird.f32 %v1268
    %vm1278 = vweird.f32 %v1272
    %vm1279 = vmor %vm1277, %vm1278
    %v1280 = vsel %vm1279, %v1272, %v1276
    %v1281 = vand.u32 2147483647, %v1268
    %vm1282 = vcmp.eq.f32.partialorder %v1281, 8.507059e+37
    %v1283 = vand.u32 %v1268, 2147483648
    %v1284 = vor.u32 1.1754944e-38, %v1283
    %v1285 = vsel %vm1282, %v1284, %v1280
    %v1286 = vmul.f32 %v1263, %v1285
    %v1287 = vrcp.pop %v1271
    %v1288 = vmul.f32 %v1271, %v1287
    %v1289 = vsub.f32 1.0, %v1288
    %v1290 = vmul.f32 %v1287, %v1289
    %v1291 = vadd.f32 %v1287, %v1290
    %vm1292 = vweird.f32 %v1271
    %vm1293 = vweird.f32 %v1287
    %vm1294 = vmor %vm1292, %vm1293
    %v1295 = vsel %vm1294, %v1287, %v1291
    %v1296 = vand.u32 2147483647, %v1271
    %vm1297 = vcmp.eq.f32.partialorder %v1296, 8.507059e+37
    %v1298 = vand.u32 %v1271, 2147483648
    %v1299 = vor.u32 1.1754944e-38, %v1298
    %v1300 = vsel %vm1297, %v1299, %v1295
    %v1301 = vmul.f32 %v1265, %v1300
    %1302 = vrot.lane.b32.xlu0 %v1090, 56
    %v1303 = vpop.permute.xlu0 %1302
    %1304 = vrot.lane.b32.xlu0 %v1093, 56
    %v1305 = vpop.permute.xlu0 %1304
    %v1309 = vsel %vm264, %v1286, 0
    %v1312 = vsel %vm264, %v1301, 0
    %1314 = vmatpush.msra.mxu0 0.0
    %1315 = vmatpush.msra.mxu0 0.0
    %1316 = vmatpush.msra.mxu0 0.0
    %1317 = vmatpush.msra.mxu0 0.0
    %1318 = vmatpush.msra.mxu0 0.0
    %1319 = vmatpush.msra.mxu0 0.0
    %1320 = vmatpush.msra.mxu0 0.0
    %1321 = vmatpush.msra.mxu0 0.0
    %1322 = vmatpush.msra.mxu0 0.0
    %1323 = vmatpush.msra.mxu0 0.0
    %1324 = vmatpush.msra.mxu0 0.0
    %1325 = vmatpush.msra.mxu0 0.0
    %1326 = vmatpush.msra.mxu0 0.0
    %1327 = vmatpush.msra.mxu0 0.0
    %1328 = vmatpush.msra.mxu0 %v1305
    %1329 = vmatpush.msra.mxu0 %v1303
    %1330 = vmatmul.f32.gmra.mxu0 %v1309
    %v1331 = vpop.f32.mrf.mxu0
    %v1332 = vadd.f32 0.0, %v1331
    %1333 = vmatmul.f32.gmra.mxu0 %v1312
    %v1334 = vpop.f32.mrf.mxu0
    %v1335 = vadd.f32 0.0, %v1334
    %1336 = vdwg.mxu0
    %1337 = vrot.lane.b32.xlu0 %v1090, 112
    %v1338 = vpop.permute.xlu0 %1337
    %1339 = vrot.lane.b32.xlu0 %v1093, 112
    %v1340 = vpop.permute.xlu0 %1339
    %1341 = vrot.lane.b32.xlu0 %v1090, 80
    %v1342 = vpop.permute.xlu0 %1341
    %1343 = vrot.lane.b32.xlu0 %v1093, 80
    %v1344 = vpop.permute.xlu0 %1343
    %v1345 = vsel %vm232, %v1338, 0
    %v1347 = vsel %vm232, %v1340, 0
    %v1349 = vsel %vm232, %v1342, 0
    %v1351 = vsel %vm232, %v1344, 0
    %1353 = vmatpush.xpose.msra.mxu0 0.0
    %1354 = vmatpush.xpose.msra.mxu0 0.0
    %1355 = vmatpush.xpose.msra.mxu0 0.0
    %1356 = vmatpush.xpose.msra.mxu0 0.0
    %1357 = vmatpush.xpose.msra.mxu0 0.0
    %1358 = vmatpush.xpose.msra.mxu0 0.0
    %1359 = vmatpush.xpose.msra.mxu0 0.0
    %1360 = vmatpush.xpose.msra.mxu0 0.0
    %1361 = vmatpush.xpose.msra.mxu0 0.0
    %1362 = vmatpush.xpose.msra.mxu0 0.0
    %1363 = vmatpush.xpose.msra.mxu0 0.0
    %1364 = vmatpush.xpose.msra.mxu0 0.0
    %1365 = vmatpush.xpose.msra.mxu0 0.0
    %1366 = vmatpush.xpose.msra.mxu0 0.0
    %1367 = vmatpush.xpose.msra.mxu0 %v1351
    %1368 = vmatpush.xpose.msra.mxu0 %v1349
    %1369 = vmatmul.f32.gmra.mxu0 %v1345
    %v1370 = vpop.f32.mrf.mxu0
    %v1371 = vadd.f32 %v186, %v1370
    %1372 = vmatmul.f32.gmra.mxu0 %v1347
    %v1373 = vpop.f32.mrf.mxu0
    %v1374 = vadd.f32 %v187, %v1373
    %1375 = vdwg.mxu0
    %v1376 = vsel %vm264, %v1371, -inf
    %1377 = vmax.xlane.f32.xlu0 %v1376
    %v1378 = vpop.xlane.xlu0 %1377
    %v1379 = vsel %vm264, %v1374, -inf
    %1380 = vmax.xlane.f32.xlu0 %v1379
    %v1381 = vpop.xlane.xlu0 %1380
    %v1382 = vsub.f32 %v1371, %v1378
    %v1383 = vsub.f32 %v1374, %v1381
    %v1384 = vmul.f32 %v1382, 1.442695
    %v1385 = vpow.pop %v1384
    %v1386 = vmul.f32 %v1383, 1.442695
    %v1387 = vpow.pop %v1386
    %v1388 = vsel %vm264, %v1385, 0.0
    %1389 = vadd.xlane.f32.xlu0 %v1388
    %v1390 = vpop.xlane.xlu0 %1389
    %v1391 = vsel %vm264, %v1387, 0.0
    %1392 = vadd.xlane.f32.xlu0 %v1391
    %v1393 = vpop.xlane.xlu0 %1392
    %v1394 = vrcp.pop %v1390
    %v1395 = vmul.f32 %v1390, %v1394
    %v1396 = vsub.f32 1.0, %v1395
    %v1397 = vmul.f32 %v1394, %v1396
    %v1398 = vadd.f32 %v1394, %v1397
    %vm1399 = vweird.f32 %v1390
    %vm1400 = vweird.f32 %v1394
    %vm1401 = vmor %vm1399, %vm1400
    %v1402 = vsel %vm1401, %v1394, %v1398
    %v1403 = vand.u32 2147483647, %v1390
    %vm1404 = vcmp.eq.f32.partialorder %v1403, 8.507059e+37
    %v1405 = vand.u32 %v1390, 2147483648
    %v1406 = vor.u32 1.1754944e-38, %v1405
    %v1407 = vsel %vm1404, %v1406, %v1402
    %v1408 = vmul.f32 %v1385, %v1407
    %v1409 = vrcp.pop %v1393
    %v1410 = vmul.f32 %v1393, %v1409
    %v1411 = vsub.f32 1.0, %v1410
    %v1412 = vmul.f32 %v1409, %v1411
    %v1413 = vadd.f32 %v1409, %v1412
    %vm1414 = vweird.f32 %v1393
    %vm1415 = vweird.f32 %v1409
    %vm1416 = vmor %vm1414, %vm1415
    %v1417 = vsel %vm1416, %v1409, %v1413
    %v1418 = vand.u32 2147483647, %v1393
    %vm1419 = vcmp.eq.f32.partialorder %v1418, 8.507059e+37
    %v1420 = vand.u32 %v1393, 2147483648
    %v1421 = vor.u32 1.1754944e-38, %v1420
    %v1422 = vsel %vm1419, %v1421, %v1417
    %v1423 = vmul.f32 %v1387, %v1422
    %1424 = vrot.lane.b32.xlu0 %v1090, 48
    %v1425 = vpop.permute.xlu0 %1424
    %1426 = vrot.lane.b32.xlu0 %v1093, 48
    %v1427 = vpop.permute.xlu0 %1426
    %v1431 = vsel %vm264, %v1408, 0
    %v1434 = vsel %vm264, %v1423, 0
    %1436 = vmatpush.msra.mxu0 0.0
    %1437 = vmatpush.msra.mxu0 0.0
    %1438 = vmatpush.msra.mxu0 0.0
    %1439 = vmatpush.msra.mxu0 0.0
    %1440 = vmatpush.msra.mxu0 0.0
    %1441 = vmatpush.msra.mxu0 0.0
    %1442 = vmatpush.msra.mxu0 0.0
    %1443 = vmatpush.msra.mxu0 0.0
    %1444 = vmatpush.msra.mxu0 0.0
    %1445 = vmatpush.msra.mxu0 0.0
    %1446 = vmatpush.msra.mxu0 0.0
    %1447 = vmatpush.msra.mxu0 0.0
    %1448 = vmatpush.msra.mxu0 0.0
    %1449 = vmatpush.msra.mxu0 0.0
    %1450 = vmatpush.msra.mxu0 %v1427
    %1451 = vmatpush.msra.mxu0 %v1425
    %1452 = vmatmul.f32.gmra.mxu0 %v1431
    %v1453 = vpop.f32.mrf.mxu0
    %v1454 = vadd.f32 0.0, %v1453
    %1455 = vmatmul.f32.gmra.mxu0 %v1434
    %v1456 = vpop.f32.mrf.mxu0
    %v1457 = vadd.f32 0.0, %v1456
    %1458 = vdwg.mxu0
    %1459 = vrot.lane.b32.xlu0 %v1090, 104
    %v1460 = vpop.permute.xlu0 %1459
    %1461 = vrot.lane.b32.xlu0 %v1093, 104
    %v1462 = vpop.permute.xlu0 %1461
    %1463 = vrot.lane.b32.xlu0 %v1090, 72
    %v1464 = vpop.permute.xlu0 %1463
    %1465 = vrot.lane.b32.xlu0 %v1093, 72
    %v1466 = vpop.permute.xlu0 %1465
    %v1467 = vsel %vm232, %v1460, 0
    %v1469 = vsel %vm232, %v1462, 0
    %v1471 = vsel %vm232, %v1464, 0
    %v1473 = vsel %vm232, %v1466, 0
    %1475 = vmatpush.xpose.msra.mxu0 0.0
    %1476 = vmatpush.xpose.msra.mxu0 0.0
    %1477 = vmatpush.xpose.msra.mxu0 0.0
    %1478 = vmatpush.xpose.msra.mxu0 0.0
    %1479 = vmatpush.xpose.msra.mxu0 0.0
    %1480 = vmatpush.xpose.msra.mxu0 0.0
    %1481 = vmatpush.xpose.msra.mxu0 0.0
    %1482 = vmatpush.xpose.msra.mxu0 0.0
    %1483 = vmatpush.xpose.msra.mxu0 0.0
    %1484 = vmatpush.xpose.msra.mxu0 0.0
    %1485 = vmatpush.xpose.msra.mxu0 0.0
    %1486 = vmatpush.xpose.msra.mxu0 0.0
    %1487 = vmatpush.xpose.msra.mxu0 0.0
    %1488 = vmatpush.xpose.msra.mxu0 0.0
    %1489 = vmatpush.xpose.msra.mxu0 %v1473
    %1490 = vmatpush.xpose.msra.mxu0 %v1471
    %1491 = vmatmul.f32.gmra.mxu0 %v1467
    %v1492 = vpop.f32.mrf.mxu0
    %v1493 = vadd.f32 %v186, %v1492
    %1494 = vmatmul.f32.gmra.mxu0 %v1469
    %v1495 = vpop.f32.mrf.mxu0
    %v1496 = vadd.f32 %v187, %v1495
    %1497 = vdwg.mxu0
    %v1498 = vsel %vm264, %v1493, -inf
    %1499 = vmax.xlane.f32.xlu0 %v1498
    %v1500 = vpop.xlane.xlu0 %1499
    %v1501 = vsel %vm264, %v1496, -inf
    %1502 = vmax.xlane.f32.xlu0 %v1501
    %v1503 = vpop.xlane.xlu0 %1502
    %v1504 = vsub.f32 %v1493, %v1500
    %v1505 = vsub.f32 %v1496, %v1503
    %v1506 = vmul.f32 %v1504, 1.442695
    %v1507 = vpow.pop %v1506
    %v1508 = vmul.f32 %v1505, 1.442695
    %v1509 = vpow.pop %v1508
    %v1510 = vsel %vm264, %v1507, 0.0
    %1511 = vadd.xlane.f32.xlu0 %v1510
    %v1512 = vpop.xlane.xlu0 %1511
    %v1513 = vsel %vm264, %v1509, 0.0
    %1514 = vadd.xlane.f32.xlu0 %v1513
    %v1515 = vpop.xlane.xlu0 %1514
    %v1516 = vrcp.pop %v1512
    %v1517 = vmul.f32 %v1512, %v1516
    %v1518 = vsub.f32 1.0, %v1517
    %v1519 = vmul.f32 %v1516, %v1518
    %v1520 = vadd.f32 %v1516, %v1519
    %vm1521 = vweird.f32 %v1512
    %vm1522 = vweird.f32 %v1516
    %vm1523 = vmor %vm1521, %vm1522
    %v1524 = vsel %vm1523, %v1516, %v1520
    %v1525 = vand.u32 2147483647, %v1512
    %vm1526 = vcmp.eq.f32.partialorder %v1525, 8.507059e+37
    %v1527 = vand.u32 %v1512, 2147483648
    %v1528 = vor.u32 1.1754944e-38, %v1527
    %v1529 = vsel %vm1526, %v1528, %v1524
    %v1530 = vmul.f32 %v1507, %v1529
    %v1531 = vrcp.pop %v1515
    %v1532 = vmul.f32 %v1515, %v1531
    %v1533 = vsub.f32 1.0, %v1532
    %v1534 = vmul.f32 %v1531, %v1533
    %v1535 = vadd.f32 %v1531, %v1534
    %vm1536 = vweird.f32 %v1515
    %vm1537 = vweird.f32 %v1531
    %vm1538 = vmor %vm1536, %vm1537
    %v1539 = vsel %vm1538, %v1531, %v1535
    %v1540 = vand.u32 2147483647, %v1515
    %vm1541 = vcmp.eq.f32.partialorder %v1540, 8.507059e+37
    %v1542 = vand.u32 %v1515, 2147483648
    %v1543 = vor.u32 1.1754944e-38, %v1542
    %v1544 = vsel %vm1541, %v1543, %v1539
    %v1545 = vmul.f32 %v1509, %v1544
    %1546 = vrot.lane.b32.xlu0 %v1090, 40
    %v1547 = vpop.permute.xlu0 %1546
    %1548 = vrot.lane.b32.xlu0 %v1093, 40
    %v1549 = vpop.permute.xlu0 %1548
    %v1553 = vsel %vm264, %v1530, 0
    %v1556 = vsel %vm264, %v1545, 0
    %1558 = vmatpush.msra.mxu0 0.0
    %1559 = vmatpush.msra.mxu0 0.0
    %1560 = vmatpush.msra.mxu0 0.0
    %1561 = vmatpush.msra.mxu0 0.0
    %1562 = vmatpush.msra.mxu0 0.0
    %1563 = vmatpush.msra.mxu0 0.0
    %1564 = vmatpush.msra.mxu0 0.0
    %1565 = vmatpush.msra.mxu0 0.0
    %1566 = vmatpush.msra.mxu0 0.0
    %1567 = vmatpush.msra.mxu0 0.0
    %1568 = vmatpush.msra.mxu0 0.0
    %1569 = vmatpush.msra.mxu0 0.0
    %1570 = vmatpush.msra.mxu0 0.0
    %1571 = vmatpush.msra.mxu0 0.0
    %1572 = vmatpush.msra.mxu0 %v1549
    %1573 = vmatpush.msra.mxu0 %v1547
    %1574 = vmatmul.f32.gmra.mxu0 %v1553
    %v1575 = vpop.f32.mrf.mxu0
    %v1576 = vadd.f32 0.0, %v1575
    %1577 = vmatmul.f32.gmra.mxu0 %v1556
    %v1578 = vpop.f32.mrf.mxu0
    %v1579 = vadd.f32 0.0, %v1578
    %1580 = vdwg.mxu0
    %1583 = vrot.lane.b32.xlu0 %v1332, 8
    %v1584 = vpop.permute.xlu0 %1583
    %1585 = vrot.lane.b32.xlu0 %v1335, 8
    %v1586 = vpop.permute.xlu0 %1585
    %1591 = vrot.lane.b32.xlu0 %v1454, 16
    %v1592 = vpop.permute.xlu0 %1591
    %1593 = vrot.lane.b32.xlu0 %v1457, 16
    %v1594 = vpop.permute.xlu0 %1593
    %1599 = vrot.lane.b32.xlu0 %v1576, 24
    %v1600 = vpop.permute.xlu0 %1599
    %1601 = vrot.lane.b32.xlu0 %v1579, 24
    %v1602 = vpop.permute.xlu0 %1601
    %v1605 = vsel %vm232, %v1210, %v1584
    %v1606 = vsel %vm232, %v1213, %v1586
    %v1607 = vsel %vm264, %v1605, %v1592
    %v1608 = vsel %vm264, %v1606, %v1594
    %v1609 = vsel %vm742, %v1607, %v1600
    %v1610 = vsel %vm742, %v1608, %v1602
    %s1611 = scalar_lea.vmem %s7, 32
    %v1612 = vld [vmem:[%s1611] sm:$0xff]
    %v1613 = vld [vmem:[%s1611 + $0x8] sm:$0xff]
    %v1614 = vld [vmem:[%s1611 + $0x10] sm:$0xff]
    %v1615 = vld [vmem:[%s1611 + $0x18] sm:$0xff]
    %v1616 = vperm.slane %v1055, 0
    %v1618 = vsel %vm107, %v1609, 0
    %v1621 = vsel %vm107, %v1610, 0
    %1623 = vmatpush.msra.mxu0 0.0
    %1624 = vmatpush.msra.mxu0 0.0
    %1625 = vmatpush.msra.mxu0 0.0
    %1626 = vmatpush.msra.mxu0 0.0
    %1627 = vmatpush.msra.mxu0 0.0
    %1628 = vmatpush.msra.mxu0 0.0
    %1629 = vmatpush.msra.mxu0 0.0
    %1630 = vmatpush.msra.mxu0 0.0
    %1631 = vmatpush.msra.mxu0 0.0
    %1632 = vmatpush.msra.mxu0 0.0
    %1633 = vmatpush.msra.mxu0 0.0
    %1634 = vmatpush.msra.mxu0 0.0
    %1635 = vmatpush.msra.mxu0 %v1615
    %1636 = vmatpush.msra.mxu0 %v1614
    %1637 = vmatpush.msra.mxu0 %v1613
    %1638 = vmatpush.msra.mxu0 %v1612
    %1639 = vmatmul.f32.gmra.mxu0 %v1618
    %v1640 = vpop.f32.mrf.mxu0
    %v1641 = vadd.f32 %v1616, %v1640
    %1642 = vmatmul.f32.gmra.mxu0 %v1621
    %v1643 = vpop.f32.mrf.mxu0
    %v1644 = vadd.f32 %v1616, %v1643
    %1645 = vdwg.mxu0
    %v1646 = vadd.f32 %v1641, %v1052
    %v1647 = vadd.f32 %v1644, %v1053
    %v1648 = vsel %vm107, %v1646, 0.0
    %1649 = vadd.xlane.f32.xlu0 %v1648
    %v1650 = vpop.xlane.xlu0 %1649
    %v1651 = vsel %vm107, %v1647, 0.0
    %1652 = vadd.xlane.f32.xlu0 %v1651
    %v1653 = vpop.xlane.xlu0 %1652
    %v1654 = vmul.f32 %v1650, %v120
    %v1655 = vmul.f32 %v1653, %v120
    %v1656 = vsub.f32 %v1646, %v1654
    %v1657 = vsub.f32 %v1647, %v1655
    %v1658 = vmul.f32 %v1656, %v1656
    %v1659 = vmul.f32 %v1657, %v1657
    %v1660 = vsel %vm107, %v1658, 0.0
    %1661 = vadd.xlane.f32.xlu0 %v1660
    %v1662 = vpop.xlane.xlu0 %1661
    %v1663 = vsel %vm107, %v1659, 0.0
    %1664 = vadd.xlane.f32.xlu0 %v1663
    %v1665 = vpop.xlane.xlu0 %1664
    %v1666 = vmul.f32 %v1662, %v120
    %v1667 = vmul.f32 %v1665, %v120
    %v1668 = vadd.f32 %v1666, 1e-12
    %v1669 = vadd.f32 %v1667, 1e-12
    %v1670 = vrsqrt.pop %v1668
    %v1671 = vmul.f32 %v1670, %v1668
    %v1672 = vmul.f32 %v1671, %v1670
    %v1673 = vmul.f32 0.5, %v1672
    %v1674 = vsub.f32 1.5, %v1673
    %v1675 = vmul.f32 %v1670, %v1674
    %vm1676 = vweird.f32 %v1668
    %vm1677 = vweird.f32 %v1670
    %vm1678 = vmor %vm1676, %vm1677
    %v1679 = vsel %vm1678, %v1670, %v1675
    %v1680 = vrsqrt.pop %v1669
    %v1681 = vmul.f32 %v1680, %v1669
    %v1682 = vmul.f32 %v1681, %v1680
    %v1683 = vmul.f32 0.5, %v1682
    %v1684 = vsub.f32 1.5, %v1683
    %v1685 = vmul.f32 %v1680, %v1684
    %vm1686 = vweird.f32 %v1669
    %vm1687 = vweird.f32 %v1680
    %vm1688 = vmor %vm1686, %vm1687
    %v1689 = vsel %vm1688, %v1680, %v1685
    %v1690 = vmul.f32 %v1656, %v1679
    %v1691 = vmul.f32 %v1657, %v1689
    %v1692 = vperm.slane %v1055, 1
    %v1693 = vmul.f32 %v1690, %v1692
    %v1694 = vmul.f32 %v1691, %v1692
    %v1695 = vperm.slane %v1055, 2
    %v1696 = vadd.f32 %v1693, %v1695
    %v1697 = vadd.f32 %v1694, %v1695
    %s1698 = scalar_lea.vmem %s8, 32
    %v1699 = vld [vmem:[%s1698] sm:$0xff]
    %v1700 = vld [vmem:[%s1698 + $0x8] sm:$0xff]
    %v1701 = vld [vmem:[%s1698 + $0x10] sm:$0xff]
    %v1702 = vld [vmem:[%s1698 + $0x18] sm:$0xff]
    %s1703 = scalar_lea.vmem %s9, 1
    %v1704 = vld [vmem:[%s1703] sm:$0x1]
    %v1706 = vperm.slane %v1704, 0
    %v1709 = vsel %vm107, %v1696, 0
    %v1712 = vsel %vm107, %v1697, 0
    %1714 = vmatpush.msra.mxu0 0.0
    %1715 = vmatpush.msra.mxu0 0.0
    %1716 = vmatpush.msra.mxu0 0.0
    %1717 = vmatpush.msra.mxu0 0.0
    %1718 = vmatpush.msra.mxu0 0.0
    %1719 = vmatpush.msra.mxu0 0.0
    %1720 = vmatpush.msra.mxu0 0.0
    %1721 = vmatpush.msra.mxu0 0.0
    %1722 = vmatpush.msra.mxu0 0.0
    %1723 = vmatpush.msra.mxu0 0.0
    %1724 = vmatpush.msra.mxu0 0.0
    %1725 = vmatpush.msra.mxu0 0.0
    %1726 = vmatpush.msra.mxu0 %v1702
    %1727 = vmatpush.msra.mxu0 %v1701
    %1728 = vmatpush.msra.mxu0 %v1700
    %1729 = vmatpush.msra.mxu0 %v1699
    %1730 = vmatmul.f32.gmra.mxu0 %v1709
    %v1731 = vpop.f32.mrf.mxu0
    %v1732 = vadd.f32 %v1706, %v1731
    %1733 = vmatmul.f32.gmra.mxu0 %v1712
    %v1734 = vpop.f32.mrf.mxu0
    %v1735 = vadd.f32 %v1706, %v1734
    %1736 = vdwg.mxu0
    %v1737 = vmul.f32 %v1732, 0.5
    %v1738 = vmul.f32 %v1735, 0.5
    %v1739 = vmul.f32 %v1732, %v876
    %v1740 = vmul.f32 %v1735, %v876
    %v1741 = vmul.f32 %v1739, %v1739
    %v1742 = vmin.f32 16.0, %v1741
    %v1743 = vmul.f32 %v1742, 2.1237322e-06
    %v1744 = vadd.f32 %v1743, 0.00028619796
    %v1745 = vmul.f32 %v1742, %v1744
    %v1746 = vadd.f32 %v1745, 0.0036580483
    %v1747 = vmul.f32 %v1742, %v1746
    %v1748 = vadd.f32 %v1747, 0.05243302
    %v1749 = vmul.f32 %v1742, %v1748
    %v1750 = vadd.f32 %v1749, 0.18741608
    %v1751 = vmul.f32 %v1742, %v1750
    %v1752 = vadd.f32 %v1751, 1.1283791
    %v1753 = vmul.f32 %v1739, %v1752
    %v1754 = vmul.f32 %v1742, 3.8918573e-05
    %v1755 = vadd.f32 %v1754, 0.001143296
    %v1756 = vmul.f32 %v1742, %v1755
    %v1757 = vadd.f32 %v1756, 0.014752088
    %v1758 = vmul.f32 %v1742, %v1757
    %v1759 = vadd.f32 %v1758, 0.112945676
    %v1760 = vmul.f32 %v1742, %v1759
    %v1761 = vadd.f32 %v1760, 0.4994258
    %v1762 = vmul.f32 %v1742, %v1761
    %v1763 = vadd.f32 %v1762, 1.0
    %v1764 = vrcp.pop %v1763
    %v1765 = vmul.f32 %v1763, %v1764
    %v1766 = vsub.f32 1.0, %v1765
    %v1767 = vmul.f32 %v1764, %v1766
    %v1768 = vadd.f32 %v1764, %v1767
    %vm1769 = vweird.f32 %v1763
    %vm1770 = vweird.f32 %v1764
    %vm1771 = vmor %vm1769, %vm1770
    %v1772 = vsel %vm1771, %v1764, %v1768
    %v1773 = vand.u32 2147483647, %v1763
    %vm1774 = vcmp.eq.f32.partialorder %v1773, 8.507059e+37
    %v1775 = vand.u32 %v1763, 2147483648
    %v1776 = vor.u32 1.1754944e-38, %v1775
    %v1777 = vsel %vm1774, %v1776, %v1772
    %v1778 = vmul.f32 %v1753, %v1777
    %v1779 = vmin.f32 %v1778, 1.0
    %v1780 = vmax.f32 %v1779, -1.0
    %v1781 = vmul.f32 %v1740, %v1740
    %v1782 = vmin.f32 16.0, %v1781
    %v1783 = vmul.f32 %v1782, 2.1237322e-06
    %v1784 = vadd.f32 %v1783, 0.00028619796
    %v1785 = vmul.f32 %v1782, %v1784
    %v1786 = vadd.f32 %v1785, 0.0036580483
    %v1787 = vmul.f32 %v1782, %v1786
    %v1788 = vadd.f32 %v1787, 0.05243302
    %v1789 = vmul.f32 %v1782, %v1788
    %v1790 = vadd.f32 %v1789, 0.18741608
    %v1791 = vmul.f32 %v1782, %v1790
    %v1792 = vadd.f32 %v1791, 1.1283791
    %v1793 = vmul.f32 %v1740, %v1792
    %v1794 = vmul.f32 %v1782, 3.8918573e-05
    %v1795 = vadd.f32 %v1794, 0.001143296
    %v1796 = vmul.f32 %v1782, %v1795
    %v1797 = vadd.f32 %v1796, 0.014752088
    %v1798 = vmul.f32 %v1782, %v1797
    %v1799 = vadd.f32 %v1798, 0.112945676
    %v1800 = vmul.f32 %v1782, %v1799
    %v1801 = vadd.f32 %v1800, 0.4994258
    %v1802 = vmul.f32 %v1782, %v1801
    %v1803 = vadd.f32 %v1802, 1.0
    %v1804 = vrcp.pop %v1803
    %v1805 = vmul.f32 %v1803, %v1804
    %v1806 = vsub.f32 1.0, %v1805
    %v1807 = vmul.f32 %v1804, %v1806
    %v1808 = vadd.f32 %v1804, %v1807
    %vm1809 = vweird.f32 %v1803
    %vm1810 = vweird.f32 %v1804
    %vm1811 = vmor %vm1809, %vm1810
    %v1812 = vsel %vm1811, %v1804, %v1808
    %v1813 = vand.u32 2147483647, %v1803
    %vm1814 = vcmp.eq.f32.partialorder %v1813, 8.507059e+37
    %v1815 = vand.u32 %v1803, 2147483648
    %v1816 = vor.u32 1.1754944e-38, %v1815
    %v1817 = vsel %vm1814, %v1816, %v1812
    %v1818 = vmul.f32 %v1793, %v1817
    %v1819 = vmin.f32 %v1818, 1.0
    %v1820 = vmax.f32 %v1819, -1.0
    %v1821 = vadd.f32 %v1780, 1.0
    %v1822 = vadd.f32 %v1820, 1.0
    %v1823 = vmul.f32 %v1737, %v1821
    %v1824 = vmul.f32 %v1738, %v1822
    %s1825 = scalar_lea.vmem %s10, 64
    %v1826 = vld [vmem:[%s1825] sm:$0xff]
    %v1827 = vld [vmem:[%s1825 + $0x8] sm:$0xff]
    %v1828 = vld [vmem:[%s1825 + $0x10] sm:$0xff]
    %v1829 = vld [vmem:[%s1825 + $0x18] sm:$0xff]
    %v1830 = vld [vmem:[%s1825 + $0x20] sm:$0xff]
    %v1831 = vld [vmem:[%s1825 + $0x28] sm:$0xff]
    %v1832 = vld [vmem:[%s1825 + $0x30] sm:$0xff]
    %v1833 = vld [vmem:[%s1825 + $0x38] sm:$0xff]
    %v1834 = vperm.slane %v1055, 3
    %v1836 = vsel %vm972, %v1823, 0
    %v1839 = vsel %vm972, %v1824, 0
    %1841 = vmatpush.msra.mxu0 0.0
    %1842 = vmatpush.msra.mxu0 0.0
    %1843 = vmatpush.msra.mxu0 0.0
    %1844 = vmatpush.msra.mxu0 0.0
    %1845 = vmatpush.msra.mxu0 0.0
    %1846 = vmatpush.msra.mxu0 0.0
    %1847 = vmatpush.msra.mxu0 0.0
    %1848 = vmatpush.msra.mxu0 0.0
    %1849 = vmatpush.msra.mxu0 %v1833
    %1850 = vmatpush.msra.mxu0 %v1832
    %1851 = vmatpush.msra.mxu0 %v1831
    %1852 = vmatpush.msra.mxu0 %v1830
    %1853 = vmatpush.msra.mxu0 %v1829
    %1854 = vmatpush.msra.mxu0 %v1828
    %1855 = vmatpush.msra.mxu0 %v1827
    %1856 = vmatpush.msra.mxu0 %v1826
    %1857 = vmatmul.f32.gmra.mxu0 %v1836
    %v1858 = vpop.f32.mrf.mxu0
    %v1859 = vadd.f32 %v1834, %v1858
    %1860 = vmatmul.f32.gmra.mxu0 %v1839
    %v1861 = vpop.f32.mrf.mxu0
    %v1862 = vadd.f32 %v1834, %v1861
    %1863 = vdwg.mxu0
    %v1864 = vadd.f32 %v1859, %v1696
    %v1865 = vadd.f32 %v1862, %v1697
    %v1866 = vsel %vm107, %v1864, 0.0
    %1867 = vadd.xlane.f32.xlu0 %v1866
    %v1868 = vpop.xlane.xlu0 %1867
    %v1869 = vsel %vm107, %v1865, 0.0
    %1870 = vadd.xlane.f32.xlu0 %v1869
    %v1871 = vpop.xlane.xlu0 %1870
    %v1872 = vmul.f32 %v1868, %v120
    %v1873 = vmul.f32 %v1871, %v120
    %v1874 = vsub.f32 %v1864, %v1872
    %v1875 = vsub.f32 %v1865, %v1873
    %v1876 = vmul.f32 %v1874, %v1874
    %v1877 = vmul.f32 %v1875, %v1875
    %v1878 = vsel %vm107, %v1876, 0.0
    %1879 = vadd.xlane.f32.xlu0 %v1878
    %v1880 = vpop.xlane.xlu0 %1879
    %v1881 = vsel %vm107, %v1877, 0.0
    %1882 = vadd.xlane.f32.xlu0 %v1881
    %v1883 = vpop.xlane.xlu0 %1882
    %v1884 = vmul.f32 %v1880, %v120
    %v1885 = vmul.f32 %v1883, %v120
    %v1886 = vadd.f32 %v1884, 1e-12
    %v1887 = vadd.f32 %v1885, 1e-12
    %v1888 = vrsqrt.pop %v1886
    %v1889 = vmul.f32 %v1888, %v1886
    %v1890 = vmul.f32 %v1889, %v1888
    %v1891 = vmul.f32 0.5, %v1890
    %v1892 = vsub.f32 1.5, %v1891
    %v1893 = vmul.f32 %v1888, %v1892
    %vm1894 = vweird.f32 %v1886
    %vm1895 = vweird.f32 %v1888
    %vm1896 = vmor %vm1894, %vm1895
    %v1897 = vsel %vm1896, %v1888, %v1893
    %v1898 = vrsqrt.pop %v1887
    %v1899 = vmul.f32 %v1898, %v1887
    %v1900 = vmul.f32 %v1899, %v1898
    %v1901 = vmul.f32 0.5, %v1900
    %v1902 = vsub.f32 1.5, %v1901
    %v1903 = vmul.f32 %v1898, %v1902
    %vm1904 = vweird.f32 %v1887
    %vm1905 = vweird.f32 %v1898
    %vm1906 = vmor %vm1904, %vm1905
    %v1907 = vsel %vm1906, %v1898, %v1903
    %v1908 = vmul.f32 %v1874, %v1897
    %v1909 = vmul.f32 %v1875, %v1907
    %v1910 = vperm.slane %v1055, 4
    %v1911 = vmul.f32 %v1908, %v1910
    %v1912 = vmul.f32 %v1909, %v1910
    %v1913 = vperm.slane %v1055, 5
    %v1914 = vadd.f32 %v1911, %v1913
    %v1915 = vadd.f32 %v1912, %v1913
    %1916 = vst.msk [vmem:[#allocation2] sm:$0xff] %vm107, %v1914
    %1917 = vst.msk [vmem:[#allocation2 + $0x8] sm:$0xff] %vm107, %v1915
    %v1918 = vld [vmem:[%s12] sm:$0xff]
    %v1919 = vld [vmem:[%s12 + $0x8] sm:$0xff]
    %v1920 = vld [vmem:[%s12 + $0x10] sm:$0xff]
    %v1921 = vld [vmem:[%s12 + $0x18] sm:$0xff]
    %v1922 = vld [vmem:[%s4 + $0x2] sm:$0x1]
    %v1923 = vperm.slane %v1922, 0
    %v1926 = vrot.slane %v1915, 7
    %vm1927 = vcmask 1041409
    %v1928 = vsel %vm1927, %v1926, %v1914
    %v1929 = vsel %vm107, %v1928, 0
    %1931 = vmatpush.msra.mxu0 0.0
    %1932 = vmatpush.msra.mxu0 0.0
    %1933 = vmatpush.msra.mxu0 0.0
    %1934 = vmatpush.msra.mxu0 0.0
    %1935 = vmatpush.msra.mxu0 0.0
    %1936 = vmatpush.msra.mxu0 0.0
    %1937 = vmatpush.msra.mxu0 0.0
    %1938 = vmatpush.msra.mxu0 0.0
    %1939 = vmatpush.msra.mxu0 0.0
    %1940 = vmatpush.msra.mxu0 0.0
    %1941 = vmatpush.msra.mxu0 0.0
    %1942 = vmatpush.msra.mxu0 0.0
    %1943 = vmatpush.msra.mxu0 %v1921
    %1944 = vmatpush.msra.mxu0 %v1920
    %1945 = vmatpush.msra.mxu0 %v1919
    %1946 = vmatpush.msra.mxu0 %v1918
    %1947 = vmatmul.f32.gmra.mxu0 %v1929
    %v1948 = vpop.f32.mrf.mxu0
    %v1949 = vadd.f32 %v1923, %v1948
    %1950 = vdwg.mxu0
    %v1951 = vtanh.pop %v1949
    %vm1952 = vcmask 254976
    %1953 = vst.msk [vmem:[#allocation4] sm:$0x3] %vm1952, %v1951
    // Predicated region
    $region54: #{tpu_custom_call.1} parent=1 // pred_check
      _
    $region55: #{tpu_custom_call.1} parent=1 // pred_check_branch
      %1955 = sbr.rel (0) target = $region57
    $region56: #{tpu_custom_call.1} parent=1 // pred_region
      %1957 = vsyncadd [#allocation3], 0
      %s1958 = sshll.u32 [#allocation2], 4
      %s1959 = int_to_ptr.vmem [resolvable:$true] %s1958
      %s1960 = sshll.u32 %s13, 4
      %s1961 = int_to_ptr.hbm [resolvable:$true] %s1960
      %1966 = dma.vmem_to_hbm [thread:$0]  %s1959, 256, %s1961, [#allocation3], 128, 128, 8
    $region57: #{tpu_custom_call.1} parent=1 // pred_fallthru
      _
    // Predicated region
    $region58: #{tpu_custom_call.1} parent=1 // pred_check
      _
    $region59: #{tpu_custom_call.1} parent=1 // pred_check_branch
      %1968 = sbr.rel (0) target = $region61
    $region60: #{tpu_custom_call.1} parent=1 // pred_region
      %1970 = vsyncadd [#allocation5], 0
      %s1972 = sshll.u32 [#allocation4], 4
      %s1973 = int_to_ptr.vmem [resolvable:$true] %s1972
      %s1974 = sshll.u32 %s14, 4
      %s1975 = int_to_ptr.hbm [resolvable:$true] %s1974
      %1977 = dma.vmem_to_hbm [thread:$0]  %s1973, 32, %s1975, [#allocation5]
    $region61: #{tpu_custom_call.1} parent=1 // pred_fallthru
      _
    // Predicated region
    $region62: #{tpu_custom_call.1} parent=1 // pred_check
      _
    $region63: #{tpu_custom_call.1} parent=1 // pred_check_branch
      %1979 = sbr.rel (0) target = $region65
    $region64: #{tpu_custom_call.1} parent=1 // pred_region
      %1981 = dma.done [#allocation3], 256
    $region65: #{tpu_custom_call.1} parent=1 // pred_fallthru
      _
    // Predicated region
    $region66: #{tpu_custom_call.1} parent=1 // pred_check
      _
    $region67: #{tpu_custom_call.1} parent=1 // pred_check_branch
      %1983 = sbr.rel (0) target = $region69
    $region68: #{tpu_custom_call.1} parent=1 // pred_region
      %1985 = dma.done [#allocation5], 32
    $region69: #{tpu_custom_call.1} parent=1 // pred_fallthru
      _
    %1986 = vsyncpa [#allocation3], 1
    %1987 = vsyncpa [#allocation5], 1

</llo_original>
